<compile_context>
chip_gen: v5e
topology: v5e:2x2
jax: 0.10.0
libtpu: 0.0.40
codegen_flags: <defaults>
</compile_context>

<pallas_src>
import functools

import numpy as np
import jax
import jax.numpy as jnp
from jax import lax
from jax.experimental import pallas as pl
from jax.experimental.pallas import tpu as pltpu


# --------------------------------- kernel ----------------------------------- #

def _boeck_kernel(x_ref, wih0_ref, wihf_ref, wihr_ref, whh_ref, b_ref,
                  wfc_ref, bfc_ref, o_ref,
                  gf, gr, hf_seq, hr_seq,
                  *, T, H, BT, Cin, num_layers):
    """Full ModelBoeck forward for one block of BT batch elements.

    x_ref    (T, BT, Cin)        time-major input block
    wih0_ref (2, Cin, 4H)        layer-0 input weights, 4 gates packed, [dir]
    wihf_ref (2*(L-1), H, 4H)    layer>=1 weights applied to fwd half of prev
    wihr_ref (2*(L-1), H, 4H)    layer>=1 weights applied to rev half of prev
    whh_ref  (2L, H, 4H)         recurrent weights, index = layer*2 + dir
    b_ref    (2L, 1, 4H)         b_ih + b_hh, same indexing
    wfc_ref  (2, H, O)           final Linear weight split [fwd, rev]
    bfc_ref  (1, O)
    o_ref    (T, BT, O)          log-probs (softmax over last dim)
    scratch: gf/gr (T*BT, 4H) gate pre-activations; hf_seq/hr_seq (T*BT, H)
    """
    f32 = jnp.float32

    def sig(v):                       # sigmoid via EUP tanh (no f32 divide)
        return 0.5 * jnp.tanh(0.5 * v) + 0.5

    for layer in range(num_layers):
        # ---- whole-sequence input projections (4 gates fused per dot) ------ #
        if layer == 0:
            xin = x_ref[...].reshape(T * BT, Cin)
            gf[...] = jnp.dot(xin, wih0_ref[0], preferred_element_type=f32) + b_ref[0]
            gr[...] = jnp.dot(xin, wih0_ref[1], preferred_element_type=f32) + b_ref[1]
        else:
            af = hf_seq[...]          # (T*BT, H) previous layer, forward dir
            ar = hr_seq[...]          # (T*BT, H) previous layer, reverse dir
            base = (layer - 1) * 2
            gf[...] = (jnp.dot(af, wihf_ref[base + 0], preferred_element_type=f32)
                       + jnp.dot(ar, wihr_ref[base + 0], preferred_element_type=f32)
                       + b_ref[layer * 2 + 0])
            gr[...] = (jnp.dot(af, wihf_ref[base + 1], preferred_element_type=f32)
                       + jnp.dot(ar, wihr_ref[base + 1], preferred_element_type=f32)
                       + b_ref[layer * 2 + 1])

        # ---- recurrent weights: loop-invariant values held in vregs --------- #
        u_f = whh_ref[layer * 2 + 0]          # (H, 4H)
        u_r = whh_ref[layer * 2 + 1]

        # ---- sequential recurrence: fwd & rev interleaved in one loop ------- #
        def step(s, carry):
            h_f, c_f, h_r, c_r = carry
            row_f = pl.multiple_of(s * BT, BT)
            row_r = pl.multiple_of((T - 1 - s) * BT, BT)

            pre_f = gf[pl.ds(row_f, BT), :] + jnp.dot(
                h_f, u_f, preferred_element_type=f32)           # (BT, 4H)
            pre_r = gr[pl.ds(row_r, BT), :] + jnp.dot(
                h_r, u_r, preferred_element_type=f32)

            i_f = sig(pre_f[:, 0:H])
            f_f = sig(pre_f[:, H:2 * H])
            g_f = jnp.tanh(pre_f[:, 2 * H:3 * H])
            o_f = sig(pre_f[:, 3 * H:4 * H])
            c_f = f_f * c_f + i_f * g_f
            h_f = o_f * jnp.tanh(c_f)

            i_r = sig(pre_r[:, 0:H])
            f_r = sig(pre_r[:, H:2 * H])
            g_r = jnp.tanh(pre_r[:, 2 * H:3 * H])
            o_r = sig(pre_r[:, 3 * H:4 * H])
            c_r = f_r * c_r + i_r * g_r
            h_r = o_r * jnp.tanh(c_r)

            hf_seq[pl.ds(row_f, BT), :] = h_f
            hr_seq[pl.ds(row_r, BT), :] = h_r
            return (h_f, c_f, h_r, c_r)

        z = jnp.zeros((BT, H), f32)
        lax.fori_loop(0, T, step, (z, z, z, z))

    # ---- head: Linear(2H -> O) + log_softmax over the class dim ------------- #
    logits = (jnp.dot(hf_seq[...], wfc_ref[0], preferred_element_type=f32)
              + jnp.dot(hr_seq[...], wfc_ref[1], preferred_element_type=f32)
              + bfc_ref[...])                                   # (T*BT, O)
    m = jnp.max(logits, axis=-1, keepdims=True)
    sh = logits - m
    lse = jnp.log(jnp.sum(jnp.exp(sh), axis=-1, keepdims=True))
    o_ref[...] = (sh - lse).reshape(T, BT, logits.shape[-1]).astype(o_ref.dtype)


# ------------------------------ host wrappers -------------------------------- #

def _pack_params(params):
    """Host-side packing: W_hh / W_ih kept gate-packed as (*, 4H) (one fused dot
    per direction), layer>=1 W_ih split into the rows that multiply the forward
    vs reverse halves of the previous layer, fc weight split into fwd/rev."""
    layers = params["layers"]
    L = len(layers)
    H = layers[0]["whh"].shape[1]
    wih0 = jnp.stack([layers[0]["wih"][d] for d in range(2)])            # (2,Cin,4H)
    whh = jnp.stack([layers[l]["whh"][d] for l in range(L) for d in range(2)])
    b = jnp.stack([layers[l]["b"][d] for l in range(L) for d in range(2)])
    if L > 1:
        wihf = jnp.stack([layers[l]["wih"][d][:H] for l in range(1, L) for d in range(2)])
        wihr = jnp.stack([layers[l]["wih"][d][H:] for l in range(1, L) for d in range(2)])
    else:  # unused dummies so the kernel signature stays fixed
        wihf = jnp.zeros((1, H, 4 * H), jnp.float32)
        wihr = jnp.zeros((1, H, 4 * H), jnp.float32)
    wfc = params["wfc"]
    return dict(wih0=wih0, wihf=wihf, wihr=wihr, whh=whh, b=b,
                wfc=jnp.stack([wfc[:H], wfc[H:]]), bfc=params["bfc"])


def _vmem_limit_bytes(T, BT, H, Cin, O):
    pad = lambda n: ((n + 127) // 128) * 128
    scratch = 4 * T * BT * (2 * pad(4 * H) + 2 * pad(H))       # gate + act scratch
    io = 2 * 4 * T * BT * (pad(Cin) + pad(O))                  # double-buffered in/out
    weights = 4 << 20
    need = scratch + io + weights
    return int(min(max(need, 32 << 20), 100 << 20))


def model_boeck_forward(params, x, *, batch_block=8):
    """x: (B, T, input_size) f32 -> (B, output_size, T) f32 log-probs."""
    B, T, Cin = x.shape
    layers = params["layers"]
    L = len(layers)
    H = layers[0]["whh"].shape[1]
    O = params["wfc"].shape[1]
    BT = batch_block
    assert BT % 8 == 0, "batch_block must be a multiple of 8 (sublane tile)"

    Bp = ((B + BT - 1) // BT) * BT
    xt = jnp.transpose(x, (1, 0, 2))                 # (T, B, Cin) time-major
    if Bp != B:
        xt = jnp.pad(xt, ((0, 0), (0, Bp - B), (0, 0)))

    p = _pack_params(params)
    kernel = functools.partial(_boeck_kernel, T=T, H=H, BT=BT, Cin=Cin,
                               num_layers=L)

    out = pl.pallas_call(
        kernel,
        out_shape=jax.ShapeDtypeStruct((T, Bp, O), jnp.float32),
        grid=(Bp // BT,),
        in_specs=[
            pl.BlockSpec((T, BT, Cin), lambda i: (0, i, 0)),
            pl.BlockSpec(p["wih0"].shape, lambda i: (0, 0, 0)),
            pl.BlockSpec(p["wihf"].shape, lambda i: (0, 0, 0)),
            pl.BlockSpec(p["wihr"].shape, lambda i: (0, 0, 0)),
            pl.BlockSpec(p["whh"].shape, lambda i: (0, 0, 0)),
            pl.BlockSpec(p["b"].shape, lambda i: (0, 0, 0)),
            pl.BlockSpec(p["wfc"].shape, lambda i: (0, 0, 0)),
            pl.BlockSpec(p["bfc"].shape, lambda i: (0, 0)),
        ],
        out_specs=pl.BlockSpec((T, BT, O), lambda i: (0, i, 0)),
        scratch_shapes=[
            pltpu.VMEM((T * BT, 4 * H), jnp.float32),   # gf: fwd gate pre-acts
            pltpu.VMEM((T * BT, 4 * H), jnp.float32),   # gr: rev gate pre-acts
            pltpu.VMEM((T * BT, H), jnp.float32),       # hf_seq
            pltpu.VMEM((T * BT, H), jnp.float32),       # hr_seq
        ],
        compiler_params=pltpu.CompilerParams(
            dimension_semantics=("parallel",),          # batch blocks -> both TCs on v7x
            vmem_limit_bytes=_vmem_limit_bytes(T, BT, H, Cin, O)),
    )(xt, p["wih0"], p["wihf"], p["wihr"], p["whh"], p["b"], p["wfc"], p["bfc"])

    out = out[:, :B, :]                       # drop batch padding
    # TODO(synk): output stays (T,B,2) from the kernel (2 classes < 128 lanes);
    # the tiny host transpose below matches torch.transpose(y, 1, 2).
    return jnp.transpose(out, (1, 2, 0))      # (B, O, T)


# ------------------------ parameters & pure-JAX reference -------------------- #

def init_params(key, input_size, hidden_size, num_layers, output_size):
    """Random init matching PyTorch U(-1/sqrt(H), 1/sqrt(H)); wih/whh stored
    transposed ((Cin,4H)/(H,4H)); b = b_ih + b_hh; gate order i,f,g,o;
    dir 0 = forward, dir 1 = reverse."""
    H4 = 4 * hidden_size
    lim = 1.0 / np.sqrt(hidden_size)
    layers = []
    for l in range(num_layers):
        cin = input_size if l == 0 else 2 * hidden_size
        key, k1, k2, k3, k4 = jax.random.split(key, 5)
        layers.append(dict(
            wih=jax.random.uniform(k1, (2, cin, H4), jnp.float32, -lim, lim),
            whh=jax.random.uniform(k2, (2, hidden_size, H4), jnp.float32, -lim, lim),
            b=(jax.random.uniform(k3, (2, 1, H4), jnp.float32, -lim, lim)
               + jax.random.uniform(k4, (2, 1, H4), jnp.float32, -lim, lim)),
        ))
    key, k5, k6 = jax.random.split(key, 3)
    limf = 1.0 / np.sqrt(2 * hidden_size)
    wfc = jax.random.uniform(k5, (2 * hidden_size, output_size), jnp.float32, -limf, limf)
    bfc = jax.random.uniform(k6, (1, output_size), jnp.float32, -limf, limf)
    return dict(layers=layers, wfc=wfc, bfc=bfc)


def _sigmoid_ref(x):
    return 1.0 / (1.0 + jnp.exp(-x))


def _bilstm_layer_ref(x, wih, whh, b, H):
    B, T, _ = x.shape

    def make_step(whh_d):
        def step(carry, gx_t):
            hprev, cprev = carry
            g = gx_t + hprev @ whh_d
            i = _sigmoid_ref(g[:, 0:H])
            f = _sigmoid_ref(g[:, H:2 * H])
            gg = jnp.tanh(g[:, 2 * H:3 * H])
            o = _sigmoid_ref(g[:, 3 * H:4 * H])
            cnew = f * cprev + i * gg
            hnew = o * jnp.tanh(cnew)
            return (hnew, cnew), hnew
        return step

    init = (jnp.zeros((B, H), jnp.float32), jnp.zeros((B, H), jnp.float32))
    gx_f = jnp.einsum("btc,cg->btg", x, wih[0]) + b[0]
    gx_r = jnp.einsum("btc,cg->btg", x, wih[1]) + b[1]
    _, hs_f = lax.scan(make_step(whh[0]), init, jnp.swapaxes(gx_f, 0, 1))
    _, hs_r = lax.scan(make_step(whh[1]), init, jnp.swapaxes(gx_r, 0, 1)[::-1])
    hs_f = jnp.swapaxes(hs_f, 0, 1)              # (B, T, H)
    hs_r = jnp.swapaxes(hs_r[::-1], 0, 1)        # (B, T, H), time-aligned
    return jnp.concatenate([hs_f, hs_r], axis=-1)


def reference_forward(params, x):
    """Pure-JAX (non-Pallas) reference of the same forward pass."""
    H = params["layers"][0]["whh"].shape[1]
    act = x
    for lay in params["layers"]:
        act = _bilstm_layer_ref(act, lay["wih"], lay["whh"], lay["b"], H)
    logits = act @ params["wfc"] + params["bfc"]
    logp = jax.nn.log_softmax(logits, axis=-1)
    return jnp.transpose(logp, (0, 2, 1))


# ------------------------------------ demo ----------------------------------- #

if __name__ == "__main__":
    INPUT_SIZE, OUTPUT_SIZE, HIDDEN, NUM_LAYERS = 120, 2, 25, 3
    batch, seq_len = 12, 8           # batch not a multiple of 8 -> exercises padding

    key = jax.random.PRNGKey(0)
    kp, kx = jax.random.split(key)
    params = init_params(kp, INPUT_SIZE, HIDDEN, NUM_LAYERS, OUTPUT_SIZE)
    x = jax.random.normal(kx, (batch, seq_len, INPUT_SIZE), jnp.float32)

    fwd = jax.jit(model_boeck_forward)
    out = jax.block_until_ready(fwd(params, x))

    assert out.shape == (batch, OUTPUT_SIZE, seq_len)
    assert out.dtype == jnp.float32
    out_np = np.asarray(out)
    assert np.all(np.isfinite(out_np))
    # log_softmax over the class dim (axis=1 after the transpose) must normalize
    assert np.allclose(np.exp(out_np).sum(axis=1), 1.0, atol=1e-4)
    # full pure-JAX reference check of the fused kernel (tight tolerance)
    ref = np.asarray(jax.block_until_ready(reference_forward(params, x)))
    assert np.allclose(out_np, ref, atol=5e-4, rtol=5e-4), \
        "max abs err = {}".format(float(np.abs(out_np - ref).max()))
    print("KERNEL_OK")
</pallas_src>

<mosaic_0001>
module attributes {stable_mosaic.version = 11 : i64} {
  func.func @_boeck_kernel(%arg0: i32, %arg1: memref<8x8x120xf32, #tpu.memory_space<vmem>>, %arg2: memref<2x120x100xf32, #tpu.memory_space<vmem>>, %arg3: memref<4x25x100xf32, #tpu.memory_space<vmem>>, %arg4: memref<4x25x100xf32, #tpu.memory_space<vmem>>, %arg5: memref<6x25x100xf32, #tpu.memory_space<vmem>>, %arg6: memref<6x1x100xf32, #tpu.memory_space<vmem>>, %arg7: memref<2x25x2xf32, #tpu.memory_space<vmem>>, %arg8: memref<1x2xf32, #tpu.memory_space<vmem>>, %arg9: memref<8x8x2xf32, #tpu.memory_space<vmem>>, %arg10: memref<64x100xf32, #tpu.memory_space<vmem>>, %arg11: memref<64x100xf32, #tpu.memory_space<vmem>>, %arg12: memref<64x25xf32, #tpu.memory_space<vmem>>, %arg13: memref<64x25xf32, #tpu.memory_space<vmem>>) attributes {dimension_semantics = [#tpu.dimension_semantics<parallel>], iteration_bounds = array<i64: 2>, scalar_prefetch = 0 : i64, scratch_operands = 4 : i64, tpu.core_type = #tpu.core_type<tc>, window_params = [{transform_indices = @transform_0, window_bounds = array<i64: 8, 8, 120>}, {pipeline_mode = #tpu.pipeline_mode<synchronous>, transform_indices = @transform_1, window_bounds = array<i64: 2, 120, 100>}, {pipeline_mode = #tpu.pipeline_mode<synchronous>, transform_indices = @transform_2, window_bounds = array<i64: 4, 25, 100>}, {pipeline_mode = #tpu.pipeline_mode<synchronous>, transform_indices = @transform_3, window_bounds = array<i64: 4, 25, 100>}, {pipeline_mode = #tpu.pipeline_mode<synchronous>, transform_indices = @transform_4, window_bounds = array<i64: 6, 25, 100>}, {pipeline_mode = #tpu.pipeline_mode<synchronous>, transform_indices = @transform_5, window_bounds = array<i64: 6, 1, 100>}, {pipeline_mode = #tpu.pipeline_mode<synchronous>, transform_indices = @transform_6, window_bounds = array<i64: 2, 25, 2>}, {pipeline_mode = #tpu.pipeline_mode<synchronous>, transform_indices = @transform_7, window_bounds = array<i64: 1, 2>}, {transform_indices = @transform_8, window_bounds = array<i64: 8, 8, 2>}]} {
    %c0 = arith.constant 0 : index
    %c0_0 = arith.constant 0 : index
    %c0_1 = arith.constant 0 : index
    %0 = vector.load %arg1[%c0, %c0_0, %c0_1] : memref<8x8x120xf32, #tpu.memory_space<vmem>>, vector<8x8x120xf32>
    %1 = vector.shape_cast %0 : vector<8x8x120xf32> to vector<64x120xf32>
    %c0_2 = arith.constant 0 : index
    %c0_3 = arith.constant 0 : index
    %c0_4 = arith.constant 0 : index
    %2 = vector.load %arg2[%c0_2, %c0_3, %c0_4] : memref<2x120x100xf32, #tpu.memory_space<vmem>>, vector<1x120x100xf32>
    %3 = vector.shape_cast %2 : vector<1x120x100xf32> to vector<120x100xf32>
    %cst = arith.constant dense<0.000000e+00> : vector<64x100xf32>
    %4 = tpu.matmul %1, %3, %cst {dimension_numbers = #tpu.dot_dimension_numbers<[1], [0], [0], [1], [0, 0, 1, 1], [], []>} : vector<64x120xf32>, vector<120x100xf32>, vector<64x100xf32> -> vector<64x100xf32>
    %c0_5 = arith.constant 0 : index
    %c0_6 = arith.constant 0 : index
    %c0_7 = arith.constant 0 : index
    %5 = vector.load %arg6[%c0_5, %c0_6, %c0_7] : memref<6x1x100xf32, #tpu.memory_space<vmem>>, vector<1x1x100xf32>
    %6 = vector.shape_cast %5 : vector<1x1x100xf32> to vector<1x100xf32>
    %7 = vector.broadcast %6 : vector<1x100xf32> to vector<64x100xf32>
    %8 = arith.addf %4, %7 : vector<64x100xf32>
    %c0_8 = arith.constant 0 : index
    %c0_9 = arith.constant 0 : index
    %9 = vector.load %arg10[%c0_8, %c0_9] : memref<64x100xf32, #tpu.memory_space<vmem>>, vector<64x100xf32>
    tpu.vector_store %arg10[%c0_8, %c0_9], %8 {strides = array<i32>} : memref<64x100xf32, #tpu.memory_space<vmem>>, vector<64x100xf32>,
    %c1 = arith.constant 1 : index
    %c0_10 = arith.constant 0 : index
    %c0_11 = arith.constant 0 : index
    %10 = vector.load %arg2[%c1, %c0_10, %c0_11] : memref<2x120x100xf32, #tpu.memory_space<vmem>>, vector<1x120x100xf32>
    %11 = vector.shape_cast %10 : vector<1x120x100xf32> to vector<120x100xf32>
    %cst_12 = arith.constant dense<0.000000e+00> : vector<64x100xf32>
    %12 = tpu.matmul %1, %11, %cst_12 {dimension_numbers = #tpu.dot_dimension_numbers<[1], [0], [0], [1], [0, 0, 1, 1], [], []>} : vector<64x120xf32>, vector<120x100xf32>, vector<64x100xf32> -> vector<64x100xf32>
    %c1_13 = arith.constant 1 : index
    %c0_14 = arith.constant 0 : index
    %c0_15 = arith.constant 0 : index
    %13 = vector.load %arg6[%c1_13, %c0_14, %c0_15] : memref<6x1x100xf32, #tpu.memory_space<vmem>>, vector<1x1x100xf32>
    %14 = vector.shape_cast %13 : vector<1x1x100xf32> to vector<1x100xf32>
    %15 = vector.broadcast %14 : vector<1x100xf32> to vector<64x100xf32>
    %16 = arith.addf %12, %15 : vector<64x100xf32>
    %c0_16 = arith.constant 0 : index
    %c0_17 = arith.constant 0 : index
    %17 = vector.load %arg11[%c0_16, %c0_17] : memref<64x100xf32, #tpu.memory_space<vmem>>, vector<64x100xf32>
    tpu.vector_store %arg11[%c0_16, %c0_17], %16 {strides = array<i32>} : memref<64x100xf32, #tpu.memory_space<vmem>>, vector<64x100xf32>,
    %c0_18 = arith.constant 0 : index
    %c0_19 = arith.constant 0 : index
    %c0_20 = arith.constant 0 : index
    %18 = vector.load %arg5[%c0_18, %c0_19, %c0_20] : memref<6x25x100xf32, #tpu.memory_space<vmem>>, vector<1x25x100xf32>
    %19 = vector.shape_cast %18 : vector<1x25x100xf32> to vector<25x100xf32>
    %c1_21 = arith.constant 1 : index
    %c0_22 = arith.constant 0 : index
    %c0_23 = arith.constant 0 : index
    %20 = vector.load %arg5[%c1_21, %c0_22, %c0_23] : memref<6x25x100xf32, #tpu.memory_space<vmem>>, vector<1x25x100xf32>
    %21 = vector.shape_cast %20 : vector<1x25x100xf32> to vector<25x100xf32>
    %cst_24 = arith.constant 0.000000e+00 : f32
    %22 = vector.broadcast %cst_24 : f32 to vector<8x25xf32>
    %c0_i32 = arith.constant 0 : i32
    %c8_i32 = arith.constant 8 : i32
    %23 = arith.addi %c0_i32, %c8_i32 : i32
    %c1_i32 = arith.constant 1 : i32
    %24:4 = scf.for %arg14 = %c0_i32 to %23 step %c1_i32 iter_args(%arg15 = %22, %arg16 = %22, %arg17 = %22, %arg18 = %22) -> (vector<8x25xf32>, vector<8x25xf32>, vector<8x25xf32>, vector<8x25xf32>)  : i32 {
      %c8_i32_123 = arith.constant 8 : i32
      %115 = arith.muli %arg14, %c8_i32_123 : i32
      %116 = tpu.assume_multiple %115, 8 : i32
      %c7_i32 = arith.constant 7 : i32
      %117 = arith.subi %c7_i32, %arg14 : i32
      %c8_i32_124 = arith.constant 8 : i32
      %118 = arith.muli %117, %c8_i32_124 : i32
      %119 = tpu.assume_multiple %118, 8 : i32
      %120 = arith.index_cast %116 : i32 to index
      %c0_125 = arith.constant 0 : index
      %121 = vector.load %arg10[%120, %c0_125] : memref<64x100xf32, #tpu.memory_space<vmem>>, vector<8x100xf32>
      %cst_126 = arith.constant dense<0.000000e+00> : vector<8x100xf32>
      %122 = tpu.matmul %arg15, %19, %cst_126 {dimension_numbers = #tpu.dot_dimension_numbers<[1], [0], [0], [1], [0, 0, 1, 1], [], []>} : vector<8x25xf32>, vector<25x100xf32>, vector<8x100xf32> -> vector<8x100xf32>
      %123 = arith.addf %121, %122 : vector<8x100xf32>
      %124 = arith.index_cast %119 : i32 to index
      %c0_127 = arith.constant 0 : index
      %125 = vector.load %arg11[%124, %c0_127] : memref<64x100xf32, #tpu.memory_space<vmem>>, vector<8x100xf32>
      %cst_128 = arith.constant dense<0.000000e+00> : vector<8x100xf32>
      %126 = tpu.matmul %arg17, %21, %cst_128 {dimension_numbers = #tpu.dot_dimension_numbers<[1], [0], [0], [1], [0, 0, 1, 1], [], []>} : vector<8x25xf32>, vector<25x100xf32>, vector<8x100xf32> -> vector<8x100xf32>
      %127 = arith.addf %125, %126 : vector<8x100xf32>
      %128 = vector.extract_strided_slice %123 {offsets = [0, 0], sizes = [8, 25], strides = [1, 1]} : vector<8x100xf32> to vector<8x25xf32>
      %cst_129 = arith.constant 5.000000e-01 : f32
      %129 = vector.broadcast %cst_129 : f32 to vector<8x25xf32>
      %130 = arith.mulf %129, %128 : vector<8x25xf32>
      %131 = math.tanh %130 : vector<8x25xf32>
      %cst_130 = arith.constant 5.000000e-01 : f32
      %132 = vector.broadcast %cst_130 : f32 to vector<8x25xf32>
      %133 = arith.mulf %132, %131 : vector<8x25xf32>
      %cst_131 = arith.constant 5.000000e-01 : f32
      %134 = vector.broadcast %cst_131 : f32 to vector<8x25xf32>
      %135 = arith.addf %133, %134 : vector<8x25xf32>
      %136 = vector.extract_strided_slice %123 {offsets = [0, 25], sizes = [8, 25], strides = [1, 1]} : vector<8x100xf32> to vector<8x25xf32>
      %cst_132 = arith.constant 5.000000e-01 : f32
      %137 = vector.broadcast %cst_132 : f32 to vector<8x25xf32>
      %138 = arith.mulf %137, %136 : vector<8x25xf32>
      %139 = math.tanh %138 : vector<8x25xf32>
      %cst_133 = arith.constant 5.000000e-01 : f32
      %140 = vector.broadcast %cst_133 : f32 to vector<8x25xf32>
      %141 = arith.mulf %140, %139 : vector<8x25xf32>
      %cst_134 = arith.constant 5.000000e-01 : f32
      %142 = vector.broadcast %cst_134 : f32 to vector<8x25xf32>
      %143 = arith.addf %141, %142 : vector<8x25xf32>
      %144 = vector.extract_strided_slice %123 {offsets = [0, 50], sizes = [8, 25], strides = [1, 1]} : vector<8x100xf32> to vector<8x25xf32>
      %145 = math.tanh %144 : vector<8x25xf32>
      %146 = vector.extract_strided_slice %123 {offsets = [0, 75], sizes = [8, 25], strides = [1, 1]} : vector<8x100xf32> to vector<8x25xf32>
      %cst_135 = arith.constant 5.000000e-01 : f32
      %147 = vector.broadcast %cst_135 : f32 to vector<8x25xf32>
      %148 = arith.mulf %147, %146 : vector<8x25xf32>
      %149 = math.tanh %148 : vector<8x25xf32>
      %cst_136 = arith.constant 5.000000e-01 : f32
      %150 = vector.broadcast %cst_136 : f32 to vector<8x25xf32>
      %151 = arith.mulf %150, %149 : vector<8x25xf32>
      %cst_137 = arith.constant 5.000000e-01 : f32
      %152 = vector.broadcast %cst_137 : f32 to vector<8x25xf32>
      %153 = arith.addf %151, %152 : vector<8x25xf32>
      %154 = arith.mulf %143, %arg16 : vector<8x25xf32>
      %155 = arith.mulf %135, %145 : vector<8x25xf32>
      %156 = arith.addf %154, %155 : vector<8x25xf32>
      %157 = math.tanh %156 : vector<8x25xf32>
      %158 = arith.mulf %153, %157 : vector<8x25xf32>
      %159 = vector.extract_strided_slice %127 {offsets = [0, 0], sizes = [8, 25], strides = [1, 1]} : vector<8x100xf32> to vector<8x25xf32>
      %cst_138 = arith.constant 5.000000e-01 : f32
      %160 = vector.broadcast %cst_138 : f32 to vector<8x25xf32>
      %161 = arith.mulf %160, %159 : vector<8x25xf32>
      %162 = math.tanh %161 : vector<8x25xf32>
      %cst_139 = arith.constant 5.000000e-01 : f32
      %163 = vector.broadcast %cst_139 : f32 to vector<8x25xf32>
      %164 = arith.mulf %163, %162 : vector<8x25xf32>
      %cst_140 = arith.constant 5.000000e-01 : f32
      %165 = vector.broadcast %cst_140 : f32 to vector<8x25xf32>
      %166 = arith.addf %164, %165 : vector<8x25xf32>
      %167 = vector.extract_strided_slice %127 {offsets = [0, 25], sizes = [8, 25], strides = [1, 1]} : vector<8x100xf32> to vector<8x25xf32>
      %cst_141 = arith.constant 5.000000e-01 : f32
      %168 = vector.broadcast %cst_141 : f32 to vector<8x25xf32>
      %169 = arith.mulf %168, %167 : vector<8x25xf32>
      %170 = math.tanh %169 : vector<8x25xf32>
      %cst_142 = arith.constant 5.000000e-01 : f32
      %171 = vector.broadcast %cst_142 : f32 to vector<8x25xf32>
      %172 = arith.mulf %171, %170 : vector<8x25xf32>
      %cst_143 = arith.constant 5.000000e-01 : f32
      %173 = vector.broadcast %cst_143 : f32 to vector<8x25xf32>
      %174 = arith.addf %172, %173 : vector<8x25xf32>
      %175 = vector.extract_strided_slice %127 {offsets = [0, 50], sizes = [8, 25], strides = [1, 1]} : vector<8x100xf32> to vector<8x25xf32>
      %176 = math.tanh %175 : vector<8x25xf32>
      %177 = vector.extract_strided_slice %127 {offsets = [0, 75], sizes = [8, 25], strides = [1, 1]} : vector<8x100xf32> to vector<8x25xf32>
      %cst_144 = arith.constant 5.000000e-01 : f32
      %178 = vector.broadcast %cst_144 : f32 to vector<8x25xf32>
      %179 = arith.mulf %178, %177 : vector<8x25xf32>
      %180 = math.tanh %179 : vector<8x25xf32>
      %cst_145 = arith.constant 5.000000e-01 : f32
      %181 = vector.broadcast %cst_145 : f32 to vector<8x25xf32>
      %182 = arith.mulf %181, %180 : vector<8x25xf32>
      %cst_146 = arith.constant 5.000000e-01 : f32
      %183 = vector.broadcast %cst_146 : f32 to vector<8x25xf32>
      %184 = arith.addf %182, %183 : vector<8x25xf32>
      %185 = arith.mulf %174, %arg18 : vector<8x25xf32>
      %186 = arith.mulf %166, %176 : vector<8x25xf32>
      %187 = arith.addf %185, %186 : vector<8x25xf32>
      %188 = math.tanh %187 : vector<8x25xf32>
      %189 = arith.mulf %184, %188 : vector<8x25xf32>
      %190 = arith.index_cast %116 : i32 to index
      %c0_147 = arith.constant 0 : index
      %191 = vector.load %arg12[%190, %c0_147] : memref<64x25xf32, #tpu.memory_space<vmem>>, vector<8x25xf32>
      tpu.vector_store %arg12[%190, %c0_147], %158 {strides = array<i32>} : memref<64x25xf32, #tpu.memory_space<vmem>>, vector<8x25xf32>,
      %192 = arith.index_cast %119 : i32 to index
      %c0_148 = arith.constant 0 : index
      %193 = vector.load %arg13[%192, %c0_148] : memref<64x25xf32, #tpu.memory_space<vmem>>, vector<8x25xf32>
      tpu.vector_store %arg13[%192, %c0_148], %189 {strides = array<i32>} : memref<64x25xf32, #tpu.memory_space<vmem>>, vector<8x25xf32>,
      scf.yield %158, %156, %189, %187 : vector<8x25xf32>, vector<8x25xf32>, vector<8x25xf32>, vector<8x25xf32>
    }
    %c8_i32_25 = arith.constant 8 : i32
    %c0_26 = arith.constant 0 : index
    %c0_27 = arith.constant 0 : index
    %25 = vector.load %arg12[%c0_26, %c0_27] : memref<64x25xf32, #tpu.memory_space<vmem>>, vector<64x25xf32>
    %c0_28 = arith.constant 0 : index
    %c0_29 = arith.constant 0 : index
    %26 = vector.load %arg13[%c0_28, %c0_29] : memref<64x25xf32, #tpu.memory_space<vmem>>, vector<64x25xf32>
    %c0_30 = arith.constant 0 : index
    %c0_31 = arith.constant 0 : index
    %c0_32 = arith.constant 0 : index
    %27 = vector.load %arg3[%c0_30, %c0_31, %c0_32] : memref<4x25x100xf32, #tpu.memory_space<vmem>>, vector<1x25x100xf32>
    %28 = vector.shape_cast %27 : vector<1x25x100xf32> to vector<25x100xf32>
    %cst_33 = arith.constant dense<0.000000e+00> : vector<64x100xf32>
    %29 = tpu.matmul %25, %28, %cst_33 {dimension_numbers = #tpu.dot_dimension_numbers<[1], [0], [0], [1], [0, 0, 1, 1], [], []>} : vector<64x25xf32>, vector<25x100xf32>, vector<64x100xf32> -> vector<64x100xf32>
    %c0_34 = arith.constant 0 : index
    %c0_35 = arith.constant 0 : index
    %c0_36 = arith.constant 0 : index
    %30 = vector.load %arg4[%c0_34, %c0_35, %c0_36] : memref<4x25x100xf32, #tpu.memory_space<vmem>>, vector<1x25x100xf32>
    %31 = vector.shape_cast %30 : vector<1x25x100xf32> to vector<25x100xf32>
    %cst_37 = arith.constant dense<0.000000e+00> : vector<64x100xf32>
    %32 = tpu.matmul %26, %31, %cst_37 {dimension_numbers = #tpu.dot_dimension_numbers<[1], [0], [0], [1], [0, 0, 1, 1], [], []>} : vector<64x25xf32>, vector<25x100xf32>, vector<64x100xf32> -> vector<64x100xf32>
    %33 = arith.addf %29, %32 : vector<64x100xf32>
    %c2 = arith.constant 2 : index
    %c0_38 = arith.constant 0 : index
    %c0_39 = arith.constant 0 : index
    %34 = vector.load %arg6[%c2, %c0_38, %c0_39] : memref<6x1x100xf32, #tpu.memory_space<vmem>>, vector<1x1x100xf32>
    %35 = vector.shape_cast %34 : vector<1x1x100xf32> to vector<1x100xf32>
    %36 = vector.broadcast %35 : vector<1x100xf32> to vector<64x100xf32>
    %37 = arith.addf %33, %36 : vector<64x100xf32>
    %c0_40 = arith.constant 0 : index
    %c0_41 = arith.constant 0 : index
    %38 = vector.load %arg10[%c0_40, %c0_41] : memref<64x100xf32, #tpu.memory_space<vmem>>, vector<64x100xf32>
    tpu.vector_store %arg10[%c0_40, %c0_41], %37 {strides = array<i32>} : memref<64x100xf32, #tpu.memory_space<vmem>>, vector<64x100xf32>,
    %c1_42 = arith.constant 1 : index
    %c0_43 = arith.constant 0 : index
    %c0_44 = arith.constant 0 : index
    %39 = vector.load %arg3[%c1_42, %c0_43, %c0_44] : memref<4x25x100xf32, #tpu.memory_space<vmem>>, vector<1x25x100xf32>
    %40 = vector.shape_cast %39 : vector<1x25x100xf32> to vector<25x100xf32>
    %cst_45 = arith.constant dense<0.000000e+00> : vector<64x100xf32>
    %41 = tpu.matmul %25, %40, %cst_45 {dimension_numbers = #tpu.dot_dimension_numbers<[1], [0], [0], [1], [0, 0, 1, 1], [], []>} : vector<64x25xf32>, vector<25x100xf32>, vector<64x100xf32> -> vector<64x100xf32>
    %c1_46 = arith.constant 1 : index
    %c0_47 = arith.constant 0 : index
    %c0_48 = arith.constant 0 : index
    %42 = vector.load %arg4[%c1_46, %c0_47, %c0_48] : memref<4x25x100xf32, #tpu.memory_space<vmem>>, vector<1x25x100xf32>
    %43 = vector.shape_cast %42 : vector<1x25x100xf32> to vector<25x100xf32>
    %cst_49 = arith.constant dense<0.000000e+00> : vector<64x100xf32>
    %44 = tpu.matmul %26, %43, %cst_49 {dimension_numbers = #tpu.dot_dimension_numbers<[1], [0], [0], [1], [0, 0, 1, 1], [], []>} : vector<64x25xf32>, vector<25x100xf32>, vector<64x100xf32> -> vector<64x100xf32>
    %45 = arith.addf %41, %44 : vector<64x100xf32>
    %c3 = arith.constant 3 : index
    %c0_50 = arith.constant 0 : index
    %c0_51 = arith.constant 0 : index
    %46 = vector.load %arg6[%c3, %c0_50, %c0_51] : memref<6x1x100xf32, #tpu.memory_space<vmem>>, vector<1x1x100xf32>
    %47 = vector.shape_cast %46 : vector<1x1x100xf32> to vector<1x100xf32>
    %48 = vector.broadcast %47 : vector<1x100xf32> to vector<64x100xf32>
    %49 = arith.addf %45, %48 : vector<64x100xf32>
    %c0_52 = arith.constant 0 : index
    %c0_53 = arith.constant 0 : index
    %50 = vector.load %arg11[%c0_52, %c0_53] : memref<64x100xf32, #tpu.memory_space<vmem>>, vector<64x100xf32>
    tpu.vector_store %arg11[%c0_52, %c0_53], %49 {strides = array<i32>} : memref<64x100xf32, #tpu.memory_space<vmem>>, vector<64x100xf32>,
    %c2_54 = arith.constant 2 : index
    %c0_55 = arith.constant 0 : index
    %c0_56 = arith.constant 0 : index
    %51 = vector.load %arg5[%c2_54, %c0_55, %c0_56] : memref<6x25x100xf32, #tpu.memory_space<vmem>>, vector<1x25x100xf32>
    %52 = vector.shape_cast %51 : vector<1x25x100xf32> to vector<25x100xf32>
    %c3_57 = arith.constant 3 : index
    %c0_58 = arith.constant 0 : index
    %c0_59 = arith.constant 0 : index
    %53 = vector.load %arg5[%c3_57, %c0_58, %c0_59] : memref<6x25x100xf32, #tpu.memory_space<vmem>>, vector<1x25x100xf32>
    %54 = vector.shape_cast %53 : vector<1x25x100xf32> to vector<25x100xf32>
    %cst_60 = arith.constant 0.000000e+00 : f32
    %55 = vector.broadcast %cst_60 : f32 to vector<8x25xf32>
    %c0_i32_61 = arith.constant 0 : i32
    %c8_i32_62 = arith.constant 8 : i32
    %56 = arith.addi %c0_i32_61, %c8_i32_62 : i32
    %c1_i32_63 = arith.constant 1 : i32
    %57:4 = scf.for %arg14 = %c0_i32_61 to %56 step %c1_i32_63 iter_args(%arg15 = %55, %arg16 = %55, %arg17 = %55, %arg18 = %55) -> (vector<8x25xf32>, vector<8x25xf32>, vector<8x25xf32>, vector<8x25xf32>)  : i32 {
      %c8_i32_123 = arith.constant 8 : i32
      %115 = arith.muli %arg14, %c8_i32_123 : i32
      %116 = tpu.assume_multiple %115, 8 : i32
      %c7_i32 = arith.constant 7 : i32
      %117 = arith.subi %c7_i32, %arg14 : i32
      %c8_i32_124 = arith.constant 8 : i32
      %118 = arith.muli %117, %c8_i32_124 : i32
      %119 = tpu.assume_multiple %118, 8 : i32
      %120 = arith.index_cast %116 : i32 to index
      %c0_125 = arith.constant 0 : index
      %121 = vector.load %arg10[%120, %c0_125] : memref<64x100xf32, #tpu.memory_space<vmem>>, vector<8x100xf32>
      %cst_126 = arith.constant dense<0.000000e+00> : vector<8x100xf32>
      %122 = tpu.matmul %arg15, %52, %cst_126 {dimension_numbers = #tpu.dot_dimension_numbers<[1], [0], [0], [1], [0, 0, 1, 1], [], []>} : vector<8x25xf32>, vector<25x100xf32>, vector<8x100xf32> -> vector<8x100xf32>
      %123 = arith.addf %121, %122 : vector<8x100xf32>
      %124 = arith.index_cast %119 : i32 to index
      %c0_127 = arith.constant 0 : index
      %125 = vector.load %arg11[%124, %c0_127] : memref<64x100xf32, #tpu.memory_space<vmem>>, vector<8x100xf32>
      %cst_128 = arith.constant dense<0.000000e+00> : vector<8x100xf32>
      %126 = tpu.matmul %arg17, %54, %cst_128 {dimension_numbers = #tpu.dot_dimension_numbers<[1], [0], [0], [1], [0, 0, 1, 1], [], []>} : vector<8x25xf32>, vector<25x100xf32>, vector<8x100xf32> -> vector<8x100xf32>
      %127 = arith.addf %125, %126 : vector<8x100xf32>
      %128 = vector.extract_strided_slice %123 {offsets = [0, 0], sizes = [8, 25], strides = [1, 1]} : vector<8x100xf32> to vector<8x25xf32>
      %cst_129 = arith.constant 5.000000e-01 : f32
      %129 = vector.broadcast %cst_129 : f32 to vector<8x25xf32>
      %130 = arith.mulf %129, %128 : vector<8x25xf32>
      %131 = math.tanh %130 : vector<8x25xf32>
      %cst_130 = arith.constant 5.000000e-01 : f32
      %132 = vector.broadcast %cst_130 : f32 to vector<8x25xf32>
      %133 = arith.mulf %132, %131 : vector<8x25xf32>
      %cst_131 = arith.constant 5.000000e-01 : f32
      %134 = vector.broadcast %cst_131 : f32 to vector<8x25xf32>
      %135 = arith.addf %133, %134 : vector<8x25xf32>
      %136 = vector.extract_strided_slice %123 {offsets = [0, 25], sizes = [8, 25], strides = [1, 1]} : vector<8x100xf32> to vector<8x25xf32>
      %cst_132 = arith.constant 5.000000e-01 : f32
      %137 = vector.broadcast %cst_132 : f32 to vector<8x25xf32>
      %138 = arith.mulf %137, %136 : vector<8x25xf32>
      %139 = math.tanh %138 : vector<8x25xf32>
      %cst_133 = arith.constant 5.000000e-01 : f32
      %140 = vector.broadcast %cst_133 : f32 to vector<8x25xf32>
      %141 = arith.mulf %140, %139 : vector<8x25xf32>
      %cst_134 = arith.constant 5.000000e-01 : f32
      %142 = vector.broadcast %cst_134 : f32 to vector<8x25xf32>
      %143 = arith.addf %141, %142 : vector<8x25xf32>
      %144 = vector.extract_strided_slice %123 {offsets = [0, 50], sizes = [8, 25], strides = [1, 1]} : vector<8x100xf32> to vector<8x25xf32>
      %145 = math.tanh %144 : vector<8x25xf32>
      %146 = vector.extract_strided_slice %123 {offsets = [0, 75], sizes = [8, 25], strides = [1, 1]} : vector<8x100xf32> to vector<8x25xf32>
      %cst_135 = arith.constant 5.000000e-01 : f32
      %147 = vector.broadcast %cst_135 : f32 to vector<8x25xf32>
      %148 = arith.mulf %147, %146 : vector<8x25xf32>
      %149 = math.tanh %148 : vector<8x25xf32>
      %cst_136 = arith.constant 5.000000e-01 : f32
      %150 = vector.broadcast %cst_136 : f32 to vector<8x25xf32>
      %151 = arith.mulf %150, %149 : vector<8x25xf32>
      %cst_137 = arith.constant 5.000000e-01 : f32
      %152 = vector.broadcast %cst_137 : f32 to vector<8x25xf32>
      %153 = arith.addf %151, %152 : vector<8x25xf32>
      %154 = arith.mulf %143, %arg16 : vector<8x25xf32>
      %155 = arith.mulf %135, %145 : vector<8x25xf32>
      %156 = arith.addf %154, %155 : vector<8x25xf32>
      %157 = math.tanh %156 : vector<8x25xf32>
      %158 = arith.mulf %153, %157 : vector<8x25xf32>
      %159 = vector.extract_strided_slice %127 {offsets = [0, 0], sizes = [8, 25], strides = [1, 1]} : vector<8x100xf32> to vector<8x25xf32>
      %cst_138 = arith.constant 5.000000e-01 : f32
      %160 = vector.broadcast %cst_138 : f32 to vector<8x25xf32>
      %161 = arith.mulf %160, %159 : vector<8x25xf32>
      %162 = math.tanh %161 : vector<8x25xf32>
      %cst_139 = arith.constant 5.000000e-01 : f32
      %163 = vector.broadcast %cst_139 : f32 to vector<8x25xf32>
      %164 = arith.mulf %163, %162 : vector<8x25xf32>
      %cst_140 = arith.constant 5.000000e-01 : f32
      %165 = vector.broadcast %cst_140 : f32 to vector<8x25xf32>
      %166 = arith.addf %164, %165 : vector<8x25xf32>
      %167 = vector.extract_strided_slice %127 {offsets = [0, 25], sizes = [8, 25], strides = [1, 1]} : vector<8x100xf32> to vector<8x25xf32>
      %cst_141 = arith.constant 5.000000e-01 : f32
      %168 = vector.broadcast %cst_141 : f32 to vector<8x25xf32>
      %169 = arith.mulf %168, %167 : vector<8x25xf32>
      %170 = math.tanh %169 : vector<8x25xf32>
      %cst_142 = arith.constant 5.000000e-01 : f32
      %171 = vector.broadcast %cst_142 : f32 to vector<8x25xf32>
      %172 = arith.mulf %171, %170 : vector<8x25xf32>
      %cst_143 = arith.constant 5.000000e-01 : f32
      %173 = vector.broadcast %cst_143 : f32 to vector<8x25xf32>
      %174 = arith.addf %172, %173 : vector<8x25xf32>
      %175 = vector.extract_strided_slice %127 {offsets = [0, 50], sizes = [8, 25], strides = [1, 1]} : vector<8x100xf32> to vector<8x25xf32>
      %176 = math.tanh %175 : vector<8x25xf32>
      %177 = vector.extract_strided_slice %127 {offsets = [0, 75], sizes = [8, 25], strides = [1, 1]} : vector<8x100xf32> to vector<8x25xf32>
      %cst_144 = arith.constant 5.000000e-01 : f32
      %178 = vector.broadcast %cst_144 : f32 to vector<8x25xf32>
      %179 = arith.mulf %178, %177 : vector<8x25xf32>
      %180 = math.tanh %179 : vector<8x25xf32>
      %cst_145 = arith.constant 5.000000e-01 : f32
      %181 = vector.broadcast %cst_145 : f32 to vector<8x25xf32>
      %182 = arith.mulf %181, %180 : vector<8x25xf32>
      %cst_146 = arith.constant 5.000000e-01 : f32
      %183 = vector.broadcast %cst_146 : f32 to vector<8x25xf32>
      %184 = arith.addf %182, %183 : vector<8x25xf32>
      %185 = arith.mulf %174, %arg18 : vector<8x25xf32>
      %186 = arith.mulf %166, %176 : vector<8x25xf32>
      %187 = arith.addf %185, %186 : vector<8x25xf32>
      %188 = math.tanh %187 : vector<8x25xf32>
      %189 = arith.mulf %184, %188 : vector<8x25xf32>
      %190 = arith.index_cast %116 : i32 to index
      %c0_147 = arith.constant 0 : index
      %191 = vector.load %arg12[%190, %c0_147] : memref<64x25xf32, #tpu.memory_space<vmem>>, vector<8x25xf32>
      tpu.vector_store %arg12[%190, %c0_147], %158 {strides = array<i32>} : memref<64x25xf32, #tpu.memory_space<vmem>>, vector<8x25xf32>,
      %192 = arith.index_cast %119 : i32 to index
      %c0_148 = arith.constant 0 : index
      %193 = vector.load %arg13[%192, %c0_148] : memref<64x25xf32, #tpu.memory_space<vmem>>, vector<8x25xf32>
      tpu.vector_store %arg13[%192, %c0_148], %189 {strides = array<i32>} : memref<64x25xf32, #tpu.memory_space<vmem>>, vector<8x25xf32>,
      scf.yield %158, %156, %189, %187 : vector<8x25xf32>, vector<8x25xf32>, vector<8x25xf32>, vector<8x25xf32>
    }
    %c8_i32_64 = arith.constant 8 : i32
    %c0_65 = arith.constant 0 : index
    %c0_66 = arith.constant 0 : index
    %58 = vector.load %arg12[%c0_65, %c0_66] : memref<64x25xf32, #tpu.memory_space<vmem>>, vector<64x25xf32>
    %c0_67 = arith.constant 0 : index
    %c0_68 = arith.constant 0 : index
    %59 = vector.load %arg13[%c0_67, %c0_68] : memref<64x25xf32, #tpu.memory_space<vmem>>, vector<64x25xf32>
    %c2_69 = arith.constant 2 : index
    %c0_70 = arith.constant 0 : index
    %c0_71 = arith.constant 0 : index
    %60 = vector.load %arg3[%c2_69, %c0_70, %c0_71] : memref<4x25x100xf32, #tpu.memory_space<vmem>>, vector<1x25x100xf32>
    %61 = vector.shape_cast %60 : vector<1x25x100xf32> to vector<25x100xf32>
    %cst_72 = arith.constant dense<0.000000e+00> : vector<64x100xf32>
    %62 = tpu.matmul %58, %61, %cst_72 {dimension_numbers = #tpu.dot_dimension_numbers<[1], [0], [0], [1], [0, 0, 1, 1], [], []>} : vector<64x25xf32>, vector<25x100xf32>, vector<64x100xf32> -> vector<64x100xf32>
    %c2_73 = arith.constant 2 : index
    %c0_74 = arith.constant 0 : index
    %c0_75 = arith.constant 0 : index
    %63 = vector.load %arg4[%c2_73, %c0_74, %c0_75] : memref<4x25x100xf32, #tpu.memory_space<vmem>>, vector<1x25x100xf32>
    %64 = vector.shape_cast %63 : vector<1x25x100xf32> to vector<25x100xf32>
    %cst_76 = arith.constant dense<0.000000e+00> : vector<64x100xf32>
    %65 = tpu.matmul %59, %64, %cst_76 {dimension_numbers = #tpu.dot_dimension_numbers<[1], [0], [0], [1], [0, 0, 1, 1], [], []>} : vector<64x25xf32>, vector<25x100xf32>, vector<64x100xf32> -> vector<64x100xf32>
    %66 = arith.addf %62, %65 : vector<64x100xf32>
    %c4 = arith.constant 4 : index
    %c0_77 = arith.constant 0 : index
    %c0_78 = arith.constant 0 : index
    %67 = vector.load %arg6[%c4, %c0_77, %c0_78] : memref<6x1x100xf32, #tpu.memory_space<vmem>>, vector<1x1x100xf32>
    %68 = vector.shape_cast %67 : vector<1x1x100xf32> to vector<1x100xf32>
    %69 = vector.broadcast %68 : vector<1x100xf32> to vector<64x100xf32>
    %70 = arith.addf %66, %69 : vector<64x100xf32>
    %c0_79 = arith.constant 0 : index
    %c0_80 = arith.constant 0 : index
    %71 = vector.load %arg10[%c0_79, %c0_80] : memref<64x100xf32, #tpu.memory_space<vmem>>, vector<64x100xf32>
    tpu.vector_store %arg10[%c0_79, %c0_80], %70 {strides = array<i32>} : memref<64x100xf32, #tpu.memory_space<vmem>>, vector<64x100xf32>,
    %c3_81 = arith.constant 3 : index
    %c0_82 = arith.constant 0 : index
    %c0_83 = arith.constant 0 : index
    %72 = vector.load %arg3[%c3_81, %c0_82, %c0_83] : memref<4x25x100xf32, #tpu.memory_space<vmem>>, vector<1x25x100xf32>
    %73 = vector.shape_cast %72 : vector<1x25x100xf32> to vector<25x100xf32>
    %cst_84 = arith.constant dense<0.000000e+00> : vector<64x100xf32>
    %74 = tpu.matmul %58, %73, %cst_84 {dimension_numbers = #tpu.dot_dimension_numbers<[1], [0], [0], [1], [0, 0, 1, 1], [], []>} : vector<64x25xf32>, vector<25x100xf32>, vector<64x100xf32> -> vector<64x100xf32>
    %c3_85 = arith.constant 3 : index
    %c0_86 = arith.constant 0 : index
    %c0_87 = arith.constant 0 : index
    %75 = vector.load %arg4[%c3_85, %c0_86, %c0_87] : memref<4x25x100xf32, #tpu.memory_space<vmem>>, vector<1x25x100xf32>
    %76 = vector.shape_cast %75 : vector<1x25x100xf32> to vector<25x100xf32>
    %cst_88 = arith.constant dense<0.000000e+00> : vector<64x100xf32>
    %77 = tpu.matmul %59, %76, %cst_88 {dimension_numbers = #tpu.dot_dimension_numbers<[1], [0], [0], [1], [0, 0, 1, 1], [], []>} : vector<64x25xf32>, vector<25x100xf32>, vector<64x100xf32> -> vector<64x100xf32>
    %78 = arith.addf %74, %77 : vector<64x100xf32>
    %c5 = arith.constant 5 : index
    %c0_89 = arith.constant 0 : index
    %c0_90 = arith.constant 0 : index
    %79 = vector.load %arg6[%c5, %c0_89, %c0_90] : memref<6x1x100xf32, #tpu.memory_space<vmem>>, vector<1x1x100xf32>
    %80 = vector.shape_cast %79 : vector<1x1x100xf32> to vector<1x100xf32>
    %81 = vector.broadcast %80 : vector<1x100xf32> to vector<64x100xf32>
    %82 = arith.addf %78, %81 : vector<64x100xf32>
    %c0_91 = arith.constant 0 : index
    %c0_92 = arith.constant 0 : index
    %83 = vector.load %arg11[%c0_91, %c0_92] : memref<64x100xf32, #tpu.memory_space<vmem>>, vector<64x100xf32>
    tpu.vector_store %arg11[%c0_91, %c0_92], %82 {strides = array<i32>} : memref<64x100xf32, #tpu.memory_space<vmem>>, vector<64x100xf32>,
    %c4_93 = arith.constant 4 : index
    %c0_94 = arith.constant 0 : index
    %c0_95 = arith.constant 0 : index
    %84 = vector.load %arg5[%c4_93, %c0_94, %c0_95] : memref<6x25x100xf32, #tpu.memory_space<vmem>>, vector<1x25x100xf32>
    %85 = vector.shape_cast %84 : vector<1x25x100xf32> to vector<25x100xf32>
    %c5_96 = arith.constant 5 : index
    %c0_97 = arith.constant 0 : index
    %c0_98 = arith.constant 0 : index
    %86 = vector.load %arg5[%c5_96, %c0_97, %c0_98] : memref<6x25x100xf32, #tpu.memory_space<vmem>>, vector<1x25x100xf32>
    %87 = vector.shape_cast %86 : vector<1x25x100xf32> to vector<25x100xf32>
    %cst_99 = arith.constant 0.000000e+00 : f32
    %88 = vector.broadcast %cst_99 : f32 to vector<8x25xf32>
    %c0_i32_100 = arith.constant 0 : i32
    %c8_i32_101 = arith.constant 8 : i32
    %89 = arith.addi %c0_i32_100, %c8_i32_101 : i32
    %c1_i32_102 = arith.constant 1 : i32
    %90:4 = scf.for %arg14 = %c0_i32_100 to %89 step %c1_i32_102 iter_args(%arg15 = %88, %arg16 = %88, %arg17 = %88, %arg18 = %88) -> (vector<8x25xf32>, vector<8x25xf32>, vector<8x25xf32>, vector<8x25xf32>)  : i32 {
      %c8_i32_123 = arith.constant 8 : i32
      %115 = arith.muli %arg14, %c8_i32_123 : i32
      %116 = tpu.assume_multiple %115, 8 : i32
      %c7_i32 = arith.constant 7 : i32
      %117 = arith.subi %c7_i32, %arg14 : i32
      %c8_i32_124 = arith.constant 8 : i32
      %118 = arith.muli %117, %c8_i32_124 : i32
      %119 = tpu.assume_multiple %118, 8 : i32
      %120 = arith.index_cast %116 : i32 to index
      %c0_125 = arith.constant 0 : index
      %121 = vector.load %arg10[%120, %c0_125] : memref<64x100xf32, #tpu.memory_space<vmem>>, vector<8x100xf32>
      %cst_126 = arith.constant dense<0.000000e+00> : vector<8x100xf32>
      %122 = tpu.matmul %arg15, %85, %cst_126 {dimension_numbers = #tpu.dot_dimension_numbers<[1], [0], [0], [1], [0, 0, 1, 1], [], []>} : vector<8x25xf32>, vector<25x100xf32>, vector<8x100xf32> -> vector<8x100xf32>
      %123 = arith.addf %121, %122 : vector<8x100xf32>
      %124 = arith.index_cast %119 : i32 to index
      %c0_127 = arith.constant 0 : index
      %125 = vector.load %arg11[%124, %c0_127] : memref<64x100xf32, #tpu.memory_space<vmem>>, vector<8x100xf32>
      %cst_128 = arith.constant dense<0.000000e+00> : vector<8x100xf32>
      %126 = tpu.matmul %arg17, %87, %cst_128 {dimension_numbers = #tpu.dot_dimension_numbers<[1], [0], [0], [1], [0, 0, 1, 1], [], []>} : vector<8x25xf32>, vector<25x100xf32>, vector<8x100xf32> -> vector<8x100xf32>
      %127 = arith.addf %125, %126 : vector<8x100xf32>
      %128 = vector.extract_strided_slice %123 {offsets = [0, 0], sizes = [8, 25], strides = [1, 1]} : vector<8x100xf32> to vector<8x25xf32>
      %cst_129 = arith.constant 5.000000e-01 : f32
      %129 = vector.broadcast %cst_129 : f32 to vector<8x25xf32>
      %130 = arith.mulf %129, %128 : vector<8x25xf32>
      %131 = math.tanh %130 : vector<8x25xf32>
      %cst_130 = arith.constant 5.000000e-01 : f32
      %132 = vector.broadcast %cst_130 : f32 to vector<8x25xf32>
      %133 = arith.mulf %132, %131 : vector<8x25xf32>
      %cst_131 = arith.constant 5.000000e-01 : f32
      %134 = vector.broadcast %cst_131 : f32 to vector<8x25xf32>
      %135 = arith.addf %133, %134 : vector<8x25xf32>
      %136 = vector.extract_strided_slice %123 {offsets = [0, 25], sizes = [8, 25], strides = [1, 1]} : vector<8x100xf32> to vector<8x25xf32>
      %cst_132 = arith.constant 5.000000e-01 : f32
      %137 = vector.broadcast %cst_132 : f32 to vector<8x25xf32>
      %138 = arith.mulf %137, %136 : vector<8x25xf32>
      %139 = math.tanh %138 : vector<8x25xf32>
      %cst_133 = arith.constant 5.000000e-01 : f32
      %140 = vector.broadcast %cst_133 : f32 to vector<8x25xf32>
      %141 = arith.mulf %140, %139 : vector<8x25xf32>
      %cst_134 = arith.constant 5.000000e-01 : f32
      %142 = vector.broadcast %cst_134 : f32 to vector<8x25xf32>
      %143 = arith.addf %141, %142 : vector<8x25xf32>
      %144 = vector.extract_strided_slice %123 {offsets = [0, 50], sizes = [8, 25], strides = [1, 1]} : vector<8x100xf32> to vector<8x25xf32>
      %145 = math.tanh %144 : vector<8x25xf32>
      %146 = vector.extract_strided_slice %123 {offsets = [0, 75], sizes = [8, 25], strides = [1, 1]} : vector<8x100xf32> to vector<8x25xf32>
      %cst_135 = arith.constant 5.000000e-01 : f32
      %147 = vector.broadcast %cst_135 : f32 to vector<8x25xf32>
      %148 = arith.mulf %147, %146 : vector<8x25xf32>
      %149 = math.tanh %148 : vector<8x25xf32>
      %cst_136 = arith.constant 5.000000e-01 : f32
      %150 = vector.broadcast %cst_136 : f32 to vector<8x25xf32>
      %151 = arith.mulf %150, %149 : vector<8x25xf32>
      %cst_137 = arith.constant 5.000000e-01 : f32
      %152 = vector.broadcast %cst_137 : f32 to vector<8x25xf32>
      %153 = arith.addf %151, %152 : vector<8x25xf32>
      %154 = arith.mulf %143, %arg16 : vector<8x25xf32>
      %155 = arith.mulf %135, %145 : vector<8x25xf32>
      %156 = arith.addf %154, %155 : vector<8x25xf32>
      %157 = math.tanh %156 : vector<8x25xf32>
      %158 = arith.mulf %153, %157 : vector<8x25xf32>
      %159 = vector.extract_strided_slice %127 {offsets = [0, 0], sizes = [8, 25], strides = [1, 1]} : vector<8x100xf32> to vector<8x25xf32>
      %cst_138 = arith.constant 5.000000e-01 : f32
      %160 = vector.broadcast %cst_138 : f32 to vector<8x25xf32>
      %161 = arith.mulf %160, %159 : vector<8x25xf32>
      %162 = math.tanh %161 : vector<8x25xf32>
      %cst_139 = arith.constant 5.000000e-01 : f32
      %163 = vector.broadcast %cst_139 : f32 to vector<8x25xf32>
      %164 = arith.mulf %163, %162 : vector<8x25xf32>
      %cst_140 = arith.constant 5.000000e-01 : f32
      %165 = vector.broadcast %cst_140 : f32 to vector<8x25xf32>
      %166 = arith.addf %164, %165 : vector<8x25xf32>
      %167 = vector.extract_strided_slice %127 {offsets = [0, 25], sizes = [8, 25], strides = [1, 1]} : vector<8x100xf32> to vector<8x25xf32>
      %cst_141 = arith.constant 5.000000e-01 : f32
      %168 = vector.broadcast %cst_141 : f32 to vector<8x25xf32>
      %169 = arith.mulf %168, %167 : vector<8x25xf32>
      %170 = math.tanh %169 : vector<8x25xf32>
      %cst_142 = arith.constant 5.000000e-01 : f32
      %171 = vector.broadcast %cst_142 : f32 to vector<8x25xf32>
      %172 = arith.mulf %171, %170 : vector<8x25xf32>
      %cst_143 = arith.constant 5.000000e-01 : f32
      %173 = vector.broadcast %cst_143 : f32 to vector<8x25xf32>
      %174 = arith.addf %172, %173 : vector<8x25xf32>
      %175 = vector.extract_strided_slice %127 {offsets = [0, 50], sizes = [8, 25], strides = [1, 1]} : vector<8x100xf32> to vector<8x25xf32>
      %176 = math.tanh %175 : vector<8x25xf32>
      %177 = vector.extract_strided_slice %127 {offsets = [0, 75], sizes = [8, 25], strides = [1, 1]} : vector<8x100xf32> to vector<8x25xf32>
      %cst_144 = arith.constant 5.000000e-01 : f32
      %178 = vector.broadcast %cst_144 : f32 to vector<8x25xf32>
      %179 = arith.mulf %178, %177 : vector<8x25xf32>
      %180 = math.tanh %179 : vector<8x25xf32>
      %cst_145 = arith.constant 5.000000e-01 : f32
      %181 = vector.broadcast %cst_145 : f32 to vector<8x25xf32>
      %182 = arith.mulf %181, %180 : vector<8x25xf32>
      %cst_146 = arith.constant 5.000000e-01 : f32
      %183 = vector.broadcast %cst_146 : f32 to vector<8x25xf32>
      %184 = arith.addf %182, %183 : vector<8x25xf32>
      %185 = arith.mulf %174, %arg18 : vector<8x25xf32>
      %186 = arith.mulf %166, %176 : vector<8x25xf32>
      %187 = arith.addf %185, %186 : vector<8x25xf32>
      %188 = math.tanh %187 : vector<8x25xf32>
      %189 = arith.mulf %184, %188 : vector<8x25xf32>
      %190 = arith.index_cast %116 : i32 to index
      %c0_147 = arith.constant 0 : index
      %191 = vector.load %arg12[%190, %c0_147] : memref<64x25xf32, #tpu.memory_space<vmem>>, vector<8x25xf32>
      tpu.vector_store %arg12[%190, %c0_147], %158 {strides = array<i32>} : memref<64x25xf32, #tpu.memory_space<vmem>>, vector<8x25xf32>,
      %192 = arith.index_cast %119 : i32 to index
      %c0_148 = arith.constant 0 : index
      %193 = vector.load %arg13[%192, %c0_148] : memref<64x25xf32, #tpu.memory_space<vmem>>, vector<8x25xf32>
      tpu.vector_store %arg13[%192, %c0_148], %189 {strides = array<i32>} : memref<64x25xf32, #tpu.memory_space<vmem>>, vector<8x25xf32>,
      scf.yield %158, %156, %189, %187 : vector<8x25xf32>, vector<8x25xf32>, vector<8x25xf32>, vector<8x25xf32>
    }
    %c8_i32_103 = arith.constant 8 : i32
    %c0_104 = arith.constant 0 : index
    %c0_105 = arith.constant 0 : index
    %91 = vector.load %arg12[%c0_104, %c0_105] : memref<64x25xf32, #tpu.memory_space<vmem>>, vector<64x25xf32>
    %c0_106 = arith.constant 0 : index
    %c0_107 = arith.constant 0 : index
    %c0_108 = arith.constant 0 : index
    %92 = vector.load %arg7[%c0_106, %c0_107, %c0_108] : memref<2x25x2xf32, #tpu.memory_space<vmem>>, vector<1x25x2xf32>
    %93 = vector.shape_cast %92 : vector<1x25x2xf32> to vector<25x2xf32>
    %cst_109 = arith.constant dense<0.000000e+00> : vector<64x2xf32>
    %94 = tpu.matmul %91, %93, %cst_109 {dimension_numbers = #tpu.dot_dimension_numbers<[1], [0], [0], [1], [0, 0, 1, 1], [], []>} : vector<64x25xf32>, vector<25x2xf32>, vector<64x2xf32> -> vector<64x2xf32>
    %c0_110 = arith.constant 0 : index
    %c0_111 = arith.constant 0 : index
    %95 = vector.load %arg13[%c0_110, %c0_111] : memref<64x25xf32, #tpu.memory_space<vmem>>, vector<64x25xf32>
    %c1_112 = arith.constant 1 : index
    %c0_113 = arith.constant 0 : index
    %c0_114 = arith.constant 0 : index
    %96 = vector.load %arg7[%c1_112, %c0_113, %c0_114] : memref<2x25x2xf32, #tpu.memory_space<vmem>>, vector<1x25x2xf32>
    %97 = vector.shape_cast %96 : vector<1x25x2xf32> to vector<25x2xf32>
    %cst_115 = arith.constant dense<0.000000e+00> : vector<64x2xf32>
    %98 = tpu.matmul %95, %97, %cst_115 {dimension_numbers = #tpu.dot_dimension_numbers<[1], [0], [0], [1], [0, 0, 1, 1], [], []>} : vector<64x25xf32>, vector<25x2xf32>, vector<64x2xf32> -> vector<64x2xf32>
    %99 = arith.addf %94, %98 : vector<64x2xf32>
    %c0_116 = arith.constant 0 : index
    %c0_117 = arith.constant 0 : index
    %100 = vector.load %arg8[%c0_116, %c0_117] : memref<1x2xf32, #tpu.memory_space<vmem>>, vector<1x2xf32>
    %101 = vector.broadcast %100 : vector<1x2xf32> to vector<64x2xf32>
    %102 = arith.addf %99, %101 : vector<64x2xf32>
    %cst_118 = arith.constant dense<0xFF800000> : vector<64xf32>
    %103 = vector.multi_reduction <maximumf>, %102, %cst_118 [1] : vector<64x2xf32> to vector<64xf32>
    %104 = vector.shape_cast %103 : vector<64xf32> to vector<64x1xf32>
    %105 = vector.broadcast %104 : vector<64x1xf32> to vector<64x2xf32>
    %106 = arith.subf %102, %105 : vector<64x2xf32>
    %107 = math.exp %106 : vector<64x2xf32>
    %cst_119 = arith.constant dense<0.000000e+00> : vector<64xf32>
    %108 = vector.multi_reduction <add>, %107, %cst_119 [1] : vector<64x2xf32> to vector<64xf32>
    %109 = vector.shape_cast %108 : vector<64xf32> to vector<64x1xf32>
    %110 = math.log %109 : vector<64x1xf32>
    %111 = vector.broadcast %110 : vector<64x1xf32> to vector<64x2xf32>
    %112 = arith.subf %106, %111 : vector<64x2xf32>
    %113 = vector.shape_cast %112 : vector<64x2xf32> to vector<8x8x2xf32>
    %c0_120 = arith.constant 0 : index
    %c0_121 = arith.constant 0 : index
    %c0_122 = arith.constant 0 : index
    %114 = vector.load %arg9[%c0_120, %c0_121, %c0_122] : memref<8x8x2xf32, #tpu.memory_space<vmem>>, vector<8x8x2xf32>
    tpu.vector_store %arg9[%c0_120, %c0_121, %c0_122], %113 {strides = array<i32>} : memref<8x8x2xf32, #tpu.memory_space<vmem>>, vector<8x8x2xf32>,
    return
  }
  func.func @transform_0(%arg0: i32) -> (i32, i32, i32) {
    %c0_i32 = arith.constant 0 : i32
    %c0_i32_0 = arith.constant 0 : i32
    %c0_i32_1 = arith.constant 0 : i32
    return %c0_i32, %arg0, %c0_i32_0 : i32, i32, i32
  }
  func.func @transform_1(%arg0: i32) -> (i32, i32, i32) {
    %c0_i32 = arith.constant 0 : i32
    %c0_i32_0 = arith.constant 0 : i32
    %c0_i32_1 = arith.constant 0 : i32
    %c0_i32_2 = arith.constant 0 : i32
    return %c0_i32, %c0_i32_0, %c0_i32_1 : i32, i32, i32
  }
  func.func @transform_2(%arg0: i32) -> (i32, i32, i32) {
    %c0_i32 = arith.constant 0 : i32
    %c0_i32_0 = arith.constant 0 : i32
    %c0_i32_1 = arith.constant 0 : i32
    %c0_i32_2 = arith.constant 0 : i32
    return %c0_i32, %c0_i32_0, %c0_i32_1 : i32, i32, i32
  }
  func.func @transform_3(%arg0: i32) -> (i32, i32, i32) {
    %c0_i32 = arith.constant 0 : i32
    %c0_i32_0 = arith.constant 0 : i32
    %c0_i32_1 = arith.constant 0 : i32
    %c0_i32_2 = arith.constant 0 : i32
    return %c0_i32, %c0_i32_0, %c0_i32_1 : i32, i32, i32
  }
  func.func @transform_4(%arg0: i32) -> (i32, i32, i32) {
    %c0_i32 = arith.constant 0 : i32
    %c0_i32_0 = arith.constant 0 : i32
    %c0_i32_1 = arith.constant 0 : i32
    %c0_i32_2 = arith.constant 0 : i32
    return %c0_i32, %c0_i32_0, %c0_i32_1 : i32, i32, i32
  }
  func.func @transform_5(%arg0: i32) -> (i32, i32, i32) {
    %c0_i32 = arith.constant 0 : i32
    %c0_i32_0 = arith.constant 0 : i32
    %c0_i32_1 = arith.constant 0 : i32
    %c0_i32_2 = arith.constant 0 : i32
    return %c0_i32, %c0_i32_0, %c0_i32_1 : i32, i32, i32
  }
  func.func @transform_6(%arg0: i32) -> (i32, i32, i32) {
    %c0_i32 = arith.constant 0 : i32
    %c0_i32_0 = arith.constant 0 : i32
    %c0_i32_1 = arith.constant 0 : i32
    %c0_i32_2 = arith.constant 0 : i32
    return %c0_i32, %c0_i32_0, %c0_i32_1 : i32, i32, i32
  }
  func.func @transform_7(%arg0: i32) -> (i32, i32) {
    %c0_i32 = arith.constant 0 : i32
    %c0_i32_0 = arith.constant 0 : i32
    %c0_i32_1 = arith.constant 0 : i32
    return %c0_i32, %c0_i32_0 : i32, i32
  }
  func.func @transform_8(%arg0: i32) -> (i32, i32, i32) {
    %c0_i32 = arith.constant 0 : i32
    %c0_i32_0 = arith.constant 0 : i32
    %c0_i32_1 = arith.constant 0 : i32
    return %c0_i32, %arg0, %c0_i32_0 : i32, i32, i32
  }
}

</mosaic_0001>

<llo_original>
// kernel: model_boeck_forward.1
$region0: #{model_boeck_forward.1}
  #allocation0 [shape = 'u32[]', space=smem, size = 0x4, offset = 0x4, fixed_abs, tag = 'smem constant byte address 0x4 - core index']
  #allocation1 [shape = 'u32[72,128]{1,0:T(1,128)}', space=vmem, size = 0x9000, scoped, tag = 'internal scratch']
  #allocation2 [shape = 'f32[64,100]{1,0:T(8,128)}', space=vmem, size = 0x8000, scoped, tag = 'scratch operand']
  #allocation3 [shape = 'f32[64,100]{1,0:T(8,128)}', space=vmem, size = 0x8000, scoped, tag = 'scratch operand']
  #allocation4 [shape = 'f32[64,25]{1,0:T(8,128)}', space=vmem, size = 0x8000, scoped, tag = 'scratch operand']
  #allocation5 [shape = 'f32[64,25]{1,0:T(8,128)}', space=vmem, size = 0x8000, scoped, tag = 'scratch operand']
  %s0 = inlined_call_operand.vmem [shape: f32[8,16,120], index: 0, kind: input, shape index: {}]
  %s1 = inlined_call_operand.vmem [shape: f32[2,120,100], index: 1, kind: input, shape index: {}]
  %s2 = inlined_call_operand.vmem [shape: f32[4,25,100], index: 2, kind: input, shape index: {}]
  %s3 = inlined_call_operand.vmem [shape: f32[4,25,100], index: 3, kind: input, shape index: {}]
  %s4 = inlined_call_operand.vmem [shape: f32[6,25,100], index: 4, kind: input, shape index: {}]
  %s5 = inlined_call_operand.vmem [shape: f32[6,1,100], index: 5, kind: input, shape index: {}]
  %s6 = inlined_call_operand.vmem [shape: f32[2,25,2], index: 6, kind: input, shape index: {}]
  %s7 = inlined_call_operand.vmem [shape: f32[1,2], index: 7, kind: input, shape index: {}]
  %s8 = inlined_call_operand.vmem [shape: f32[8,16,2], index: 8, kind: output, shape index: {}]
  %s9 = sld [smem:[#allocation0]]
  $region158: #{model_boeck_forward.1} parent=0
    _
  %s11 = ssub.s32 1, %s9
  %s12 = scalar_select 0, %s11, %s9
  $region1: #{model_boeck_forward.1} parent=0
    #allocation6 [shape = 'u8[65536]{0}', space=vmem, size = 0x10000, scoped, tag = 'input window, operand 0']
    #allocation7 [shape = 'u8[65536]{0}', space=vmem, size = 0x10000, scoped, tag = 'output window, operand 0']
    loop: start=0, step=1, limit=4
    $region2: #{model_boeck_forward.1} parent=1 // loop_pre_header
      _
    $region3: #{model_boeck_forward.1} parent=1 // loop_header
      %s14 = sphi 0, %s18
      %p15 = scmp.ge.s32.totalorder %s14, 4
      %s24 = sphi 0, %s26
      %s27 = sphi 0, %s24
      %s28 = sphi 0, %s27
      %s44 = sphi 0, %s28
      %s48 = sphi 0, %s48
      %s50 = sphi 0, %s48
      %s51 = sphi 0, %s50
      %s65 = sphi 0, %s51
      %s69 = sphi 0, %s69
      %s71 = sphi 0, %s69
      %s72 = sphi 0, %s71
      %s86 = sphi 0, %s72
      %s90 = sphi 0, %s90
      %s92 = sphi 0, %s90
      %s93 = sphi 0, %s92
      %s107 = sphi 0, %s93
      %s111 = sphi 0, %s111
      %s113 = sphi 0, %s111
      %s114 = sphi 0, %s113
      %s128 = sphi 0, %s114
      %s132 = sphi 0, %s132
      %s134 = sphi 0, %s132
      %s135 = sphi 0, %s134
      %s149 = sphi 0, %s135
      %s153 = sphi 0, %s153
      %s155 = sphi 0, %s153
      %s156 = sphi 0, %s155
      %s170 = sphi 0, %s156
      %s174 = sphi 0, %s174
      %s176 = sphi 0, %s174
      %s177 = sphi 0, %s176
      %s191 = sphi 0, %s177
      %s197 = sphi 0, %s199
      %s200 = sphi 0, %s197
      %s201 = sphi 0, %s200
      %s217 = sphi 0, %s201
    $region4: #{model_boeck_forward.1} parent=1 // loop_header_branch
      %17 = sbr.rel (%p15) target = $region8
    $region5: #{model_boeck_forward.1} parent=1 // loop_body
      %s19 = ssub.s32 %s14, 1
      %s20 = ssub.s32 %s14, 2
      %s21 = sadd.s32 %s14, 1
      %s22 = ssub.s32 %s14, %s21
      %p23 = scmp.eq.s32.totalorder %s22, 0
      %s25 = sadd.s32 %s24, 1
      %s26 = scalar_select %p23, %s24, %s25
      %p29 = pneg %p23
      %p30 = scmp.eq.s32.totalorder %s14, 1
      %p31 = por %p29, %p30
      %p32 = scmp.ne.s32.totalorder %s24, %s27
      %p33 = scmp.eq.s32.totalorder %s14, 0
      %p34 = por %p32, %p33
      %p35 = scmp.ne.s32.totalorder %s24, %s27
      %p36 = scmp.eq.s32.totalorder %s19, 1
      %p37 = por %p35, %p36
      %p38 = scmp.ne.s32.totalorder %s27, %s28
      %p39 = scmp.eq.s32.totalorder %s19, 0
      %p40 = por %p38, %p39
      %p41 = scmp.ne.s32.totalorder %s27, %s28
      %p42 = scmp.eq.s32.totalorder %s20, 1
      %p43 = por %p41, %p42
      %p45 = scmp.ne.s32.totalorder %s28, %s44
      %p46 = scmp.eq.s32.totalorder %s20, 0
      %p47 = por %p45, %p46
      %s49 = sadd.s32 %s48, 1
      %p52 = scmp.eq.s32.totalorder %s14, 1
      %p53 = scmp.ne.s32.totalorder %s48, %s50
      %p54 = scmp.eq.s32.totalorder %s14, 0
      %p55 = por %p53, %p54
      %p56 = scmp.ne.s32.totalorder %s48, %s50
      %p57 = scmp.eq.s32.totalorder %s19, 1
      %p58 = por %p56, %p57
      %p59 = scmp.ne.s32.totalorder %s50, %s51
      %p60 = scmp.eq.s32.totalorder %s19, 0
      %p61 = por %p59, %p60
      %p62 = scmp.ne.s32.totalorder %s50, %s51
      %p63 = scmp.eq.s32.totalorder %s20, 1
      %p64 = por %p62, %p63
      %p66 = scmp.ne.s32.totalorder %s51, %s65
      %p67 = scmp.eq.s32.totalorder %s20, 0
      %p68 = por %p66, %p67
      %s70 = sadd.s32 %s69, 1
      %p73 = scmp.eq.s32.totalorder %s14, 1
      %p74 = scmp.ne.s32.totalorder %s69, %s71
      %p75 = scmp.eq.s32.totalorder %s14, 0
      %p76 = por %p74, %p75
      %p77 = scmp.ne.s32.totalorder %s69, %s71
      %p78 = scmp.eq.s32.totalorder %s19, 1
      %p79 = por %p77, %p78
      %p80 = scmp.ne.s32.totalorder %s71, %s72
      %p81 = scmp.eq.s32.totalorder %s19, 0
      %p82 = por %p80, %p81
      %p83 = scmp.ne.s32.totalorder %s71, %s72
      %p84 = scmp.eq.s32.totalorder %s20, 1
      %p85 = por %p83, %p84
      %p87 = scmp.ne.s32.totalorder %s72, %s86
      %p88 = scmp.eq.s32.totalorder %s20, 0
      %p89 = por %p87, %p88
      %s91 = sadd.s32 %s90, 1
      %p94 = scmp.eq.s32.totalorder %s14, 1
      %p95 = scmp.ne.s32.totalorder %s90, %s92
      %p96 = scmp.eq.s32.totalorder %s14, 0
      %p97 = por %p95, %p96
      %p98 = scmp.ne.s32.totalorder %s90, %s92
      %p99 = scmp.eq.s32.totalorder %s19, 1
      %p100 = por %p98, %p99
      %p101 = scmp.ne.s32.totalorder %s92, %s93
      %p102 = scmp.eq.s32.totalorder %s19, 0
      %p103 = por %p101, %p102
      %p104 = scmp.ne.s32.totalorder %s92, %s93
      %p105 = scmp.eq.s32.totalorder %s20, 1
      %p106 = por %p104, %p105
      %p108 = scmp.ne.s32.totalorder %s93, %s107
      %p109 = scmp.eq.s32.totalorder %s20, 0
      %p110 = por %p108, %p109
      %s112 = sadd.s32 %s111, 1
      %p115 = scmp.eq.s32.totalorder %s14, 1
      %p116 = scmp.ne.s32.totalorder %s111, %s113
      %p117 = scmp.eq.s32.totalorder %s14, 0
      %p118 = por %p116, %p117
      %p119 = scmp.ne.s32.totalorder %s111, %s113
      %p120 = scmp.eq.s32.totalorder %s19, 1
      %p121 = por %p119, %p120
      %p122 = scmp.ne.s32.totalorder %s113, %s114
      %p123 = scmp.eq.s32.totalorder %s19, 0
      %p124 = por %p122, %p123
      %p125 = scmp.ne.s32.totalorder %s113, %s114
      %p126 = scmp.eq.s32.totalorder %s20, 1
      %p127 = por %p125, %p126
      %p129 = scmp.ne.s32.totalorder %s114, %s128
      %p130 = scmp.eq.s32.totalorder %s20, 0
      %p131 = por %p129, %p130
      %s133 = sadd.s32 %s132, 1
      %p136 = scmp.eq.s32.totalorder %s14, 1
      %p137 = scmp.ne.s32.totalorder %s132, %s134
      %p138 = scmp.eq.s32.totalorder %s14, 0
      %p139 = por %p137, %p138
      %p140 = scmp.ne.s32.totalorder %s132, %s134
      %p141 = scmp.eq.s32.totalorder %s19, 1
      %p142 = por %p140, %p141
      %p143 = scmp.ne.s32.totalorder %s134, %s135
      %p144 = scmp.eq.s32.totalorder %s19, 0
      %p145 = por %p143, %p144
      %p146 = scmp.ne.s32.totalorder %s134, %s135
      %p147 = scmp.eq.s32.totalorder %s20, 1
      %p148 = por %p146, %p147
      %p150 = scmp.ne.s32.totalorder %s135, %s149
      %p151 = scmp.eq.s32.totalorder %s20, 0
      %p152 = por %p150, %p151
      %s154 = sadd.s32 %s153, 1
      %p157 = scmp.eq.s32.totalorder %s14, 1
      %p158 = scmp.ne.s32.totalorder %s153, %s155
      %p159 = scmp.eq.s32.totalorder %s14, 0
      %p160 = por %p158, %p159
      %p161 = scmp.ne.s32.totalorder %s153, %s155
      %p162 = scmp.eq.s32.totalorder %s19, 1
      %p163 = por %p161, %p162
      %p164 = scmp.ne.s32.totalorder %s155, %s156
      %p165 = scmp.eq.s32.totalorder %s19, 0
      %p166 = por %p164, %p165
      %p167 = scmp.ne.s32.totalorder %s155, %s156
      %p168 = scmp.eq.s32.totalorder %s20, 1
      %p169 = por %p167, %p168
      %p171 = scmp.ne.s32.totalorder %s156, %s170
      %p172 = scmp.eq.s32.totalorder %s20, 0
      %p173 = por %p171, %p172
      %s175 = sadd.s32 %s174, 1
      %p178 = scmp.eq.s32.totalorder %s14, 1
      %p179 = scmp.ne.s32.totalorder %s174, %s176
      %p180 = scmp.eq.s32.totalorder %s14, 0
      %p181 = por %p179, %p180
      %p182 = scmp.ne.s32.totalorder %s174, %s176
      %p183 = scmp.eq.s32.totalorder %s19, 1
      %p184 = por %p182, %p183
      %p185 = scmp.ne.s32.totalorder %s176, %s177
      %p186 = scmp.eq.s32.totalorder %s19, 0
      %p187 = por %p185, %p186
      %p188 = scmp.ne.s32.totalorder %s176, %s177
      %p189 = scmp.eq.s32.totalorder %s20, 1
      %p190 = por %p188, %p189
      %p192 = scmp.ne.s32.totalorder %s177, %s191
      %p193 = scmp.eq.s32.totalorder %s20, 0
      %p194 = por %p192, %p193
      %s195 = ssub.s32 %s14, %s21
      %p196 = scmp.eq.s32.totalorder %s195, 0
      %s198 = sadd.s32 %s197, 1
      %s199 = scalar_select %p196, %s197, %s198
      %p202 = pneg %p196
      %p203 = scmp.eq.s32.totalorder %s14, 1
      %p204 = por %p202, %p203
      %p205 = scmp.ne.s32.totalorder %s197, %s200
      %p206 = scmp.eq.s32.totalorder %s14, 0
      %p207 = por %p205, %p206
      %p208 = scmp.ne.s32.totalorder %s197, %s200
      %p209 = scmp.eq.s32.totalorder %s19, 1
      %p210 = por %p208, %p209
      %p211 = scmp.ne.s32.totalorder %s200, %s201
      %p212 = scmp.eq.s32.totalorder %s19, 0
      %p213 = por %p211, %p212
      %p214 = scmp.ne.s32.totalorder %s200, %s201
      %p215 = scmp.eq.s32.totalorder %s20, 1
      %p216 = por %p214, %p215
      %p218 = scmp.ne.s32.totalorder %s201, %s217
      %p219 = scmp.eq.s32.totalorder %s20, 0
      %p220 = por %p218, %p219
      %p221 = scmp.le.s32.totalorder 1, %s14
      %p222 = scmp.lt.s32.totalorder %s14, 3
      %p223 = pnand %p221, %p222
      %p224 = pneg %p223
      // Predicated region
      $region9: #{model_boeck_forward.1} parent=5 // pred_check
        _
      $region10: #{model_boeck_forward.1} parent=5 // pred_check_branch
        %226 = sbr.rel (%p223) target = $region12
      $region11: #{model_boeck_forward.1} parent=5 // pred_region
        %s227 = ssub.s32 %s14, 1
        // Predicated region
        $region13: #{model_boeck_forward.1} parent=11 // pred_check
          %p228 = pneg %p61
        $region14: #{model_boeck_forward.1} parent=11 // pred_check_branch
          %230 = sbr.rel (%p228) target = $region16
        $region15: #{model_boeck_forward.1} parent=11 // pred_region
          _
        $region16: #{model_boeck_forward.1} parent=11 // pred_fallthru
          _
        // Predicated region
        $region17: #{model_boeck_forward.1} parent=11 // pred_check
          %p231 = pneg %p82
        $region18: #{model_boeck_forward.1} parent=11 // pred_check_branch
          %233 = sbr.rel (%p231) target = $region20
        $region19: #{model_boeck_forward.1} parent=11 // pred_region
          _
        $region20: #{model_boeck_forward.1} parent=11 // pred_fallthru
          _
        // Predicated region
        $region21: #{model_boeck_forward.1} parent=11 // pred_check
          %p234 = pneg %p103
        $region22: #{model_boeck_forward.1} parent=11 // pred_check_branch
          %236 = sbr.rel (%p234) target = $region24
        $region23: #{model_boeck_forward.1} parent=11 // pred_region
          _
        $region24: #{model_boeck_forward.1} parent=11 // pred_fallthru
          _
        // Predicated region
        $region25: #{model_boeck_forward.1} parent=11 // pred_check
          %p237 = pneg %p124
        $region26: #{model_boeck_forward.1} parent=11 // pred_check_branch
          %239 = sbr.rel (%p237) target = $region28
        $region27: #{model_boeck_forward.1} parent=11 // pred_region
          _
        $region28: #{model_boeck_forward.1} parent=11 // pred_fallthru
          _
        // Predicated region
        $region29: #{model_boeck_forward.1} parent=11 // pred_check
          %p240 = pneg %p145
        $region30: #{model_boeck_forward.1} parent=11 // pred_check_branch
          %242 = sbr.rel (%p240) target = $region32
        $region31: #{model_boeck_forward.1} parent=11 // pred_region
          _
        $region32: #{model_boeck_forward.1} parent=11 // pred_fallthru
          _
        // Predicated region
        $region33: #{model_boeck_forward.1} parent=11 // pred_check
          %p243 = pneg %p166
        $region34: #{model_boeck_forward.1} parent=11 // pred_check_branch
          %245 = sbr.rel (%p243) target = $region36
        $region35: #{model_boeck_forward.1} parent=11 // pred_region
          _
        $region36: #{model_boeck_forward.1} parent=11 // pred_fallthru
          _
        // Predicated region
        $region37: #{model_boeck_forward.1} parent=11 // pred_check
          %p246 = pneg %p187
        $region38: #{model_boeck_forward.1} parent=11 // pred_check_branch
          %248 = sbr.rel (%p246) target = $region40
        $region39: #{model_boeck_forward.1} parent=11 // pred_region
          _
        $region40: #{model_boeck_forward.1} parent=11 // pred_fallthru
          _
      $region12: #{model_boeck_forward.1} parent=5 // pred_fallthru
        _
      %p249 = scmp.lt.s32.totalorder %s14, 2
      // Predicated region
      $region41: #{model_boeck_forward.1} parent=5 // pred_check
        %p250 = pneg %p249
      $region42: #{model_boeck_forward.1} parent=5 // pred_check_branch
        %252 = sbr.rel (%p250) target = $region44
      $region43: #{model_boeck_forward.1} parent=5 // pred_region
        // Predicated region
        $region45: #{model_boeck_forward.1} parent=43 // pred_check
          %p253 = pneg %p34
        $region46: #{model_boeck_forward.1} parent=43 // pred_check_branch
          %255 = sbr.rel (%p253) target = $region48
        $region47: #{model_boeck_forward.1} parent=43 // pred_region
          %s256 = sand.u32 %s24, 1
          %s257 = sand.u32 %s24, 1
          %s258 = smul.addr %s257, 64
          %s259 = scalar_lea.vmem [#allocation6], %s258
          %s260 = smul.addr %s14, 8
          %s261 = scalar_lea.vmem %s0, %s260
          // Predicated region
          $region49: #{model_boeck_forward.1} parent=47 // pred_check
            _
          $region50: #{model_boeck_forward.1} parent=47 // pred_check_branch
            %263 = sbr.rel (0) target = $region52
          $region51: #{model_boeck_forward.1} parent=47 // pred_region
            // Predicated region
            $region53: #{model_boeck_forward.1} parent=51 // pred_check
              _
            $region54: #{model_boeck_forward.1} parent=51 // pred_check_branch
              %265 = sbr.rel (0) target = $region56
            $region55: #{model_boeck_forward.1} parent=51 // pred_region
              // Predicated region
              $region68: #{model_boeck_forward.1} parent=55 // pred_check
                _
              $region69: #{model_boeck_forward.1} parent=55 // pred_check_branch
                %295 = sbr.rel (0) target = $region71
              $region70: #{model_boeck_forward.1} parent=55 // pred_region
                loop: start=0, step=1, limit=1
                $region72: #{model_boeck_forward.1} parent=70 // loop_pre_header
                  _
                $region73: #{model_boeck_forward.1} parent=70 // loop_header
                  %s297 = sphi 0, %s301
                  %p298 = scmp.ge.s32.totalorder %s297, 1
                  %s302 = sphi %s261, %s261
                  %s303 = sphi %s259, %s259
                $region74: #{model_boeck_forward.1} parent=70 // loop_header_branch
                  %300 = sbr.rel (%p298) target = $region78
                $region75: #{model_boeck_forward.1} parent=70 // loop_body
                  %v304 = vld [vmem:[%s302] sm:$0xff]
                  %305 = vst [vmem:[%s303] sm:$0xff] %v304
                  %v306 = vld [vmem:[%s302 + $0x10] sm:$0xff]
                  %307 = vst [vmem:[%s303 + $0x8] sm:$0xff] %v306
                  %v308 = vld [vmem:[%s302 + $0x20] sm:$0xff]
                  %309 = vst [vmem:[%s303 + $0x10] sm:$0xff] %v308
                  %v310 = vld [vmem:[%s302 + $0x30] sm:$0xff]
                  %311 = vst [vmem:[%s303 + $0x18] sm:$0xff] %v310
                  %v312 = vld [vmem:[%s302 + $0x40] sm:$0xff]
                  %313 = vst [vmem:[%s303 + $0x20] sm:$0xff] %v312
                  %v314 = vld [vmem:[%s302 + $0x50] sm:$0xff]
                  %315 = vst [vmem:[%s303 + $0x28] sm:$0xff] %v314
                  %v316 = vld [vmem:[%s302 + $0x60] sm:$0xff]
                  %317 = vst [vmem:[%s303 + $0x30] sm:$0xff] %v316
                  %v318 = vld [vmem:[%s302 + $0x70] sm:$0xff]
                  %319 = vst [vmem:[%s303 + $0x38] sm:$0xff] %v318
                $region76: #{model_boeck_forward.1} parent=70 // loop_footer
                  %s301 = sadd.s32 1, %s297
                $region77: #{model_boeck_forward.1} parent=70 // loop_footer_branch
                  %296 = sbr.rel target = $region73
                $region78: #{model_boeck_forward.1} parent=70 // loop_exit
                  _
              $region71: #{model_boeck_forward.1} parent=55 // pred_fallthru
                _
              // Predicated region
              $region79: #{model_boeck_forward.1} parent=55 // pred_check
                _
              $region80: #{model_boeck_forward.1} parent=55 // pred_check_branch
                %321 = sbr.rel target = $region82
              $region81: #{model_boeck_forward.1} parent=55 // pred_region
                _
              $region82: #{model_boeck_forward.1} parent=55 // pred_fallthru
                _
            $region56: #{model_boeck_forward.1} parent=51 // pred_fallthru
              _
            // Predicated region
            $region57: #{model_boeck_forward.1} parent=51 // pred_check
              _
            $region58: #{model_boeck_forward.1} parent=51 // pred_check_branch
              %267 = sbr.rel target = $region60
            $region59: #{model_boeck_forward.1} parent=51 // pred_region
              %s269 = ssub.s32 256, 1
              loop: start=0, step=1, limit=1
              $region61: #{model_boeck_forward.1} parent=59 // loop_pre_header
                _
              $region62: #{model_boeck_forward.1} parent=59 // loop_header
                %s271 = sphi 0, %s275
                %p272 = scmp.ge.s32.totalorder %s271, 1
                %s276 = sphi %s261, %s261
                %s277 = sphi %s259, %s259
              $region63: #{model_boeck_forward.1} parent=59 // loop_header_branch
                %274 = sbr.rel (%p272) target = $region67
              $region64: #{model_boeck_forward.1} parent=59 // loop_body
                %v278 = vld [vmem:[%s276] sm:%s269]
                %279 = vst [vmem:[%s277] sm:%s269] %v278
                %v280 = vld [vmem:[%s276 + $0x10] sm:%s269]
                %281 = vst [vmem:[%s277 + $0x8] sm:%s269] %v280
                %v282 = vld [vmem:[%s276 + $0x20] sm:%s269]
                %283 = vst [vmem:[%s277 + $0x10] sm:%s269] %v282
                %v284 = vld [vmem:[%s276 + $0x30] sm:%s269]
                %285 = vst [vmem:[%s277 + $0x18] sm:%s269] %v284
                %v286 = vld [vmem:[%s276 + $0x40] sm:%s269]
                %287 = vst [vmem:[%s277 + $0x20] sm:%s269] %v286
                %v288 = vld [vmem:[%s276 + $0x50] sm:%s269]
                %289 = vst [vmem:[%s277 + $0x28] sm:%s269] %v288
                %v290 = vld [vmem:[%s276 + $0x60] sm:%s269]
                %291 = vst [vmem:[%s277 + $0x30] sm:%s269] %v290
                %v292 = vld [vmem:[%s276 + $0x70] sm:%s269]
                %293 = vst [vmem:[%s277 + $0x38] sm:%s269] %v292
              $region65: #{model_boeck_forward.1} parent=59 // loop_footer
                %s275 = sadd.s32 1, %s271
              $region66: #{model_boeck_forward.1} parent=59 // loop_footer_branch
                %270 = sbr.rel target = $region62
              $region67: #{model_boeck_forward.1} parent=59 // loop_exit
                _
            $region60: #{model_boeck_forward.1} parent=51 // pred_fallthru
              _
          $region52: #{model_boeck_forward.1} parent=47 // pred_fallthru
            _
          %322 = vnop
        $region48: #{model_boeck_forward.1} parent=43 // pred_fallthru
          _
      $region44: #{model_boeck_forward.1} parent=5 // pred_fallthru
        _
      %p323 = scmp.le.s32.totalorder 1, %s14
      %p324 = scmp.lt.s32.totalorder %s14, 3
      %p325 = pnand %p323, %p324
      %p326 = pneg %p325
      // Predicated region
      $region83: #{model_boeck_forward.1} parent=5 // pred_check
        _
      $region84: #{model_boeck_forward.1} parent=5 // pred_check_branch
        %328 = sbr.rel (%p325) target = $region86
      $region85: #{model_boeck_forward.1} parent=5 // pred_region
        %s329 = ssub.s32 %s14, 1
        %s330 = sand.u32 %s27, 1
        %s331 = sand.u32 %s27, 1
        %s332 = smul.addr %s331, 64
        %s333 = scalar_lea.vmem [#allocation6], %s332
        // Predicated region
        $region87: #{model_boeck_forward.1} parent=85 // pred_check
          %p334 = pneg %p40
        $region88: #{model_boeck_forward.1} parent=85 // pred_check_branch
          %336 = sbr.rel (%p334) target = $region90
        $region89: #{model_boeck_forward.1} parent=85 // pred_region
          _
        $region90: #{model_boeck_forward.1} parent=85 // pred_fallthru
          _
        %s337 = sand.u32 %s27, 1
        %s338 = sand.u32 %s27, 1
        %s339 = smul.addr %s338, 64
        %s340 = scalar_lea.vmem [#allocation6], %s339
        %p341 = pneg %p40
        %p342 = pneg %p37
        %p343 = pneg %p61
        %p344 = pneg %p58
        %p345 = pneg %p82
        %p346 = pneg %p79
        %p347 = pneg %p103
        %p348 = pneg %p100
        %p349 = pneg %p124
        %p350 = pneg %p121
        %p351 = pneg %p145
        %p352 = pneg %p142
        %p353 = pneg %p166
        %p354 = pneg %p163
        %p355 = pneg %p187
        %p356 = pneg %p184
        %p357 = pneg %p213
        %p358 = pneg %p210
        %s359 = sand.u32 %s200, 1
        %s360 = sand.u32 %s200, 1
        %s361 = smul.addr %s360, 64
        %s362 = scalar_lea.vmem [#allocation7], %s361
        %v363 = vld [vmem:[%s333] sm:$0xff]
        %v364 = vld [vmem:[%s333 + $0x8] sm:$0xff]
        %v365 = vld [vmem:[%s333 + $0x10] sm:$0xff]
        %v366 = vld [vmem:[%s333 + $0x18] sm:$0xff]
        %v367 = vld [vmem:[%s333 + $0x20] sm:$0xff]
        %v368 = vld [vmem:[%s333 + $0x28] sm:$0xff]
        %v369 = vld [vmem:[%s333 + $0x30] sm:$0xff]
        %v370 = vld [vmem:[%s333 + $0x38] sm:$0xff]
        %v371 = vld [vmem:[%s1] sm:$0xff]
        %v372 = vld [vmem:[%s1 + $0x8] sm:$0xff]
        %v373 = vld [vmem:[%s1 + $0x10] sm:$0xff]
        %v374 = vld [vmem:[%s1 + $0x18] sm:$0xff]
        %v375 = vld [vmem:[%s1 + $0x20] sm:$0xff]
        %v376 = vld [vmem:[%s1 + $0x28] sm:$0xff]
        %v377 = vld [vmem:[%s1 + $0x30] sm:$0xff]
        %v378 = vld [vmem:[%s1 + $0x38] sm:$0xff]
        %v379 = vld [vmem:[%s1 + $0x40] sm:$0xff]
        %v380 = vld [vmem:[%s1 + $0x48] sm:$0xff]
        %v381 = vld [vmem:[%s1 + $0x50] sm:$0xff]
        %v382 = vld [vmem:[%s1 + $0x58] sm:$0xff]
        %v383 = vld [vmem:[%s1 + $0x60] sm:$0xff]
        %v384 = vld [vmem:[%s1 + $0x68] sm:$0xff]
        %v385 = vld [vmem:[%s1 + $0x70] sm:$0xff]
        %v386 = vld [vmem:[%s5] sm:$0x1]
        %v388 = vperm.slane %v386, 0
        %vm390 = vcmask 982016
        %v392 = vsel %vm390, %v363, 0
        %v395 = vsel %vm390, %v364, 0
        %v398 = vsel %vm390, %v365, 0
        %v401 = vsel %vm390, %v366, 0
        %v404 = vsel %vm390, %v367, 0
        %v407 = vsel %vm390, %v368, 0
        %v410 = vsel %vm390, %v369, 0
        %v413 = vsel %vm390, %v370, 0
        %415 = vmatpush.msra.mxu0 0.0
        %416 = vmatpush.msra.mxu0 %v385
        %417 = vmatpush.msra.mxu0 %v384
        %418 = vmatpush.msra.mxu0 %v383
        %419 = vmatpush.msra.mxu0 %v382
        %420 = vmatpush.msra.mxu0 %v381
        %421 = vmatpush.msra.mxu0 %v380
        %422 = vmatpush.msra.mxu0 %v379
        %423 = vmatpush.msra.mxu0 %v378
        %424 = vmatpush.msra.mxu0 %v377
        %425 = vmatpush.msra.mxu0 %v376
        %426 = vmatpush.msra.mxu0 %v375
        %427 = vmatpush.msra.mxu0 %v374
        %428 = vmatpush.msra.mxu0 %v373
        %429 = vmatpush.msra.mxu0 %v372
        %430 = vmatpush.msra.mxu0 %v371
        %431 = vmatmul.f32.gmra.mxu0 %v392
        %v432 = vpop.f32.mrf.mxu0
        %v433 = vadd.f32 %v388, %v432
        %434 = vmatmul.f32.gmra.mxu0 %v395
        %v435 = vpop.f32.mrf.mxu0
        %v436 = vadd.f32 %v388, %v435
        %437 = vmatmul.f32.gmra.mxu0 %v398
        %v438 = vpop.f32.mrf.mxu0
        %v439 = vadd.f32 %v388, %v438
        %440 = vmatmul.f32.gmra.mxu0 %v401
        %v441 = vpop.f32.mrf.mxu0
        %v442 = vadd.f32 %v388, %v441
        %443 = vmatmul.f32.gmra.mxu0 %v404
        %v444 = vpop.f32.mrf.mxu0
        %v445 = vadd.f32 %v388, %v444
        %446 = vmatmul.f32.gmra.mxu0 %v407
        %v447 = vpop.f32.mrf.mxu0
        %v448 = vadd.f32 %v388, %v447
        %449 = vmatmul.f32.gmra.mxu0 %v410
        %v450 = vpop.f32.mrf.mxu0
        %v451 = vadd.f32 %v388, %v450
        %452 = vmatmul.f32.gmra.mxu0 %v413
        %v453 = vpop.f32.mrf.mxu0
        %v454 = vadd.f32 %v388, %v453
        %455 = vdwg.mxu0
        %vm456 = vcmask 818176
        %457 = vst.msk [vmem:[#allocation2] sm:$0xff] %vm456, %v433
        %458 = vst.msk [vmem:[#allocation2 + $0x8] sm:$0xff] %vm456, %v436
        %459 = vst.msk [vmem:[#allocation2 + $0x10] sm:$0xff] %vm456, %v439
        %460 = vst.msk [vmem:[#allocation2 + $0x18] sm:$0xff] %vm456, %v442
        %461 = vst.msk [vmem:[#allocation2 + $0x20] sm:$0xff] %vm456, %v445
        %462 = vst.msk [vmem:[#allocation2 + $0x28] sm:$0xff] %vm456, %v448
        %463 = vst.msk [vmem:[#allocation2 + $0x30] sm:$0xff] %vm456, %v451
        %464 = vst.msk [vmem:[#allocation2 + $0x38] sm:$0xff] %vm456, %v454
        %s465 = scalar_lea.vmem %s1, 120
        %v466 = vld [vmem:[%s465] sm:$0xff]
        %v467 = vld [vmem:[%s465 + $0x8] sm:$0xff]
        %v468 = vld [vmem:[%s465 + $0x10] sm:$0xff]
        %v469 = vld [vmem:[%s465 + $0x18] sm:$0xff]
        %v470 = vld [vmem:[%s465 + $0x20] sm:$0xff]
        %v471 = vld [vmem:[%s465 + $0x28] sm:$0xff]
        %v472 = vld [vmem:[%s465 + $0x30] sm:$0xff]
        %v473 = vld [vmem:[%s465 + $0x38] sm:$0xff]
        %v474 = vld [vmem:[%s465 + $0x40] sm:$0xff]
        %v475 = vld [vmem:[%s465 + $0x48] sm:$0xff]
        %v476 = vld [vmem:[%s465 + $0x50] sm:$0xff]
        %v477 = vld [vmem:[%s465 + $0x58] sm:$0xff]
        %v478 = vld [vmem:[%s465 + $0x60] sm:$0xff]
        %v479 = vld [vmem:[%s465 + $0x68] sm:$0xff]
        %v480 = vld [vmem:[%s465 + $0x70] sm:$0xff]
        %s481 = scalar_lea.vmem %s5, 1
        %v482 = vld [vmem:[%s481] sm:$0x1]
        %v484 = vperm.slane %v482, 0
        %486 = vmatpush.msra.mxu0 0.0
        %487 = vmatpush.msra.mxu0 %v480
        %488 = vmatpush.msra.mxu0 %v479
        %489 = vmatpush.msra.mxu0 %v478
        %490 = vmatpush.msra.mxu0 %v477
        %491 = vmatpush.msra.mxu0 %v476
        %492 = vmatpush.msra.mxu0 %v475
        %493 = vmatpush.msra.mxu0 %v474
        %494 = vmatpush.msra.mxu0 %v473
        %495 = vmatpush.msra.mxu0 %v472
        %496 = vmatpush.msra.mxu0 %v471
        %497 = vmatpush.msra.mxu0 %v470
        %498 = vmatpush.msra.mxu0 %v469
        %499 = vmatpush.msra.mxu0 %v468
        %500 = vmatpush.msra.mxu0 %v467
        %501 = vmatpush.msra.mxu0 %v466
        %502 = vmatmul.f32.gmra.mxu0 %v392
        %v503 = vpop.f32.mrf.mxu0
        %v504 = vadd.f32 %v484, %v503
        %505 = vmatmul.f32.gmra.mxu0 %v395
        %v506 = vpop.f32.mrf.mxu0
        %v507 = vadd.f32 %v484, %v506
        %508 = vmatmul.f32.gmra.mxu0 %v398
        %v509 = vpop.f32.mrf.mxu0
        %v510 = vadd.f32 %v484, %v509
        %511 = vmatmul.f32.gmra.mxu0 %v401
        %v512 = vpop.f32.mrf.mxu0
        %v513 = vadd.f32 %v484, %v512
        %514 = vmatmul.f32.gmra.mxu0 %v404
        %v515 = vpop.f32.mrf.mxu0
        %v516 = vadd.f32 %v484, %v515
        %517 = vmatmul.f32.gmra.mxu0 %v407
        %v518 = vpop.f32.mrf.mxu0
        %v519 = vadd.f32 %v484, %v518
        %520 = vmatmul.f32.gmra.mxu0 %v410
        %v521 = vpop.f32.mrf.mxu0
        %v522 = vadd.f32 %v484, %v521
        %523 = vmatmul.f32.gmra.mxu0 %v413
        %v524 = vpop.f32.mrf.mxu0
        %v525 = vadd.f32 %v484, %v524
        %526 = vdwg.mxu0
        %527 = vst.msk [vmem:[#allocation3] sm:$0xff] %vm456, %v504
        %528 = vst.msk [vmem:[#allocation3 + $0x8] sm:$0xff] %vm456, %v507
        %529 = vst.msk [vmem:[#allocation3 + $0x10] sm:$0xff] %vm456, %v510
        %530 = vst.msk [vmem:[#allocation3 + $0x18] sm:$0xff] %vm456, %v513
        %531 = vst.msk [vmem:[#allocation3 + $0x20] sm:$0xff] %vm456, %v516
        %532 = vst.msk [vmem:[#allocation3 + $0x28] sm:$0xff] %vm456, %v519
        %533 = vst.msk [vmem:[#allocation3 + $0x30] sm:$0xff] %vm456, %v522
        %534 = vst.msk [vmem:[#allocation3 + $0x38] sm:$0xff] %vm456, %v525
        %v535 = vld [vmem:[%s4] sm:$0xff]
        %v536 = vld [vmem:[%s4 + $0x8] sm:$0xff]
        %v537 = vld [vmem:[%s4 + $0x10] sm:$0xff]
        %v538 = vld [vmem:[%s4 + $0x18] sm:$0x1]
        %s539 = scalar_lea.vmem %s4, 32
        %v540 = vld [vmem:[%s539] sm:$0xff]
        %v541 = vld [vmem:[%s539 + $0x8] sm:$0xff]
        %v542 = vld [vmem:[%s539 + $0x10] sm:$0xff]
        %v543 = vld [vmem:[%s539 + $0x18] sm:$0x1]
        loop: start=0, step=1, limit=8
        $region91: #{model_boeck_forward.1} parent=85 // loop_pre_header
          _
        $region92: #{model_boeck_forward.1} parent=85 // loop_header
          %s545 = sphi 0, %s549
          %p546 = scmp.ge.s32.totalorder %s545, 8
          %v550 = vphi 0.0, %v642
          %v551 = vphi 0.0, %v636
          %v552 = vphi 0.0, %v664
          %v553 = vphi 0.0, %v658
        $region93: #{model_boeck_forward.1} parent=85 // loop_header_branch
          %548 = sbr.rel (%p546) target = $region97
        $region94: #{model_boeck_forward.1} parent=85 // loop_body
          %s554 = smul.u32 %s545, 8
          %s555 = ssub.s32 7, %s545
          %s556 = smul.u32 %s555, 8
          %s557 = scalar_lea.vmem [#allocation2], %s554
          %v558 = vld [vmem:[%s557] sm:$0xff]
          %560 = vrot.lane.b32.xlu0 %v550, 53
          %v561 = vpop.permute.xlu0 %560
          %vm562 = vcmask 203776
          %v563 = vsel %vm562, %v561, 0
          %vm565 = vcmask 1040384
          %v567 = vsel %vm565, %v538, 0
          %569 = vmatpush.msra.mxu0 0.0
          %570 = vmatpush.msra.mxu0 0.0
          %571 = vmatpush.msra.mxu0 0.0
          %572 = vmatpush.msra.mxu0 0.0
          %573 = vmatpush.msra.mxu0 0.0
          %574 = vmatpush.msra.mxu0 0.0
          %575 = vmatpush.msra.mxu0 0.0
          %576 = vmatpush.msra.mxu0 0.0
          %577 = vmatpush.msra.mxu0 0.0
          %578 = vmatpush.msra.mxu0 0.0
          %579 = vmatpush.msra.mxu0 0.0
          %580 = vmatpush.msra.mxu0 0.0
          %581 = vmatpush.msra.mxu0 %v567
          %582 = vmatpush.msra.mxu0 %v537
          %583 = vmatpush.msra.mxu0 %v536
          %584 = vmatpush.msra.mxu0 %v535
          %585 = vmatmul.f32.gmra.mxu0 %v563
          %v586 = vpop.f32.mrf.mxu0
          %v587 = vadd.f32 0.0, %v586
          %588 = vdwg.mxu0
          %v589 = vadd.f32 %v558, %v587
          %s590 = scalar_lea.vmem [#allocation3], %s556
          %v591 = vld [vmem:[%s590] sm:$0xff]
          %593 = vrot.lane.b32.xlu0 %v552, 53
          %v594 = vpop.permute.xlu0 %593
          %v595 = vsel %vm562, %v594, 0
          %v598 = vsel %vm565, %v543, 0
          %600 = vmatpush.msra.mxu0 0.0
          %601 = vmatpush.msra.mxu0 0.0
          %602 = vmatpush.msra.mxu0 0.0
          %603 = vmatpush.msra.mxu0 0.0
          %604 = vmatpush.msra.mxu0 0.0
          %605 = vmatpush.msra.mxu0 0.0
          %606 = vmatpush.msra.mxu0 0.0
          %607 = vmatpush.msra.mxu0 0.0
          %608 = vmatpush.msra.mxu0 0.0
          %609 = vmatpush.msra.mxu0 0.0
          %610 = vmatpush.msra.mxu0 0.0
          %611 = vmatpush.msra.mxu0 0.0
          %612 = vmatpush.msra.mxu0 %v598
          %613 = vmatpush.msra.mxu0 %v542
          %614 = vmatpush.msra.mxu0 %v541
          %615 = vmatpush.msra.mxu0 %v540
          %616 = vmatmul.f32.gmra.mxu0 %v595
          %v617 = vpop.f32.mrf.mxu0
          %v618 = vadd.f32 0.0, %v617
          %619 = vdwg.mxu0
          %v620 = vadd.f32 %v591, %v618
          %v621 = vmul.f32 %v589, 0.5
          %v622 = vtanh.pop %v621
          %v623 = vmul.f32 %v622, 0.5
          %v624 = vadd.f32 %v623, 0.5
          %v625 = vtanh.pop %v589
          %v626 = vmul.f32 %v624, %v551
          %628 = vrot.lane.b32.xlu0 %v625, 78
          %v629 = vpop.permute.xlu0 %628
          %v631 = vmul.f32 %v624, %v629
          %633 = vrot.lane.b32.xlu0 %v631, 25
          %v634 = vpop.permute.xlu0 %633
          %v636 = vadd.f32 %v626, %v634
          %v637 = vtanh.pop %v636
          %639 = vrot.lane.b32.xlu0 %v637, 50
          %v640 = vpop.permute.xlu0 %639
          %v642 = vmul.f32 %v624, %v640
          %v643 = vmul.f32 %v620, 0.5
          %v644 = vtanh.pop %v643
          %v645 = vmul.f32 %v644, 0.5
          %v646 = vadd.f32 %v645, 0.5
          %v647 = vtanh.pop %v620
          %v648 = vmul.f32 %v646, %v553
          %650 = vrot.lane.b32.xlu0 %v647, 78
          %v651 = vpop.permute.xlu0 %650
          %v653 = vmul.f32 %v646, %v651
          %655 = vrot.lane.b32.xlu0 %v653, 25
          %v656 = vpop.permute.xlu0 %655
          %v658 = vadd.f32 %v648, %v656
          %v659 = vtanh.pop %v658
          %661 = vrot.lane.b32.xlu0 %v659, 50
          %v662 = vpop.permute.xlu0 %661
          %v664 = vmul.f32 %v646, %v662
          %666 = vrot.lane.b32.xlu0 %v642, 53
          %v667 = vpop.permute.xlu0 %666
          %s669 = scalar_lea.vmem [#allocation4], %s554
          %670 = vst.msk [vmem:[%s669] sm:$0xff] %vm562, %v667
          %672 = vrot.lane.b32.xlu0 %v664, 53
          %v673 = vpop.permute.xlu0 %672
          %s675 = scalar_lea.vmem [#allocation5], %s556
          %676 = vst.msk [vmem:[%s675] sm:$0xff] %vm562, %v673
        $region95: #{model_boeck_forward.1} parent=85 // loop_footer
          %s549 = sadd.s32 1, %s545
        $region96: #{model_boeck_forward.1} parent=85 // loop_footer_branch
          %544 = sbr.rel target = $region92
        $region97: #{model_boeck_forward.1} parent=85 // loop_exit
          _
        %v677 = vld [vmem:[#allocation4] sm:$0xff]
        %v678 = vld [vmem:[#allocation4 + $0x8] sm:$0xff]
        %v679 = vld [vmem:[#allocation4 + $0x10] sm:$0xff]
        %v680 = vld [vmem:[#allocation4 + $0x18] sm:$0xff]
        %v681 = vld [vmem:[#allocation4 + $0x20] sm:$0xff]
        %v682 = vld [vmem:[#allocation4 + $0x28] sm:$0xff]
        %v683 = vld [vmem:[#allocation4 + $0x30] sm:$0xff]
        %v684 = vld [vmem:[#allocation4 + $0x38] sm:$0xff]
        %v685 = vld [vmem:[#allocation5] sm:$0xff]
        %v686 = vld [vmem:[#allocation5 + $0x8] sm:$0xff]
        %v687 = vld [vmem:[#allocation5 + $0x10] sm:$0xff]
        %v688 = vld [vmem:[#allocation5 + $0x18] sm:$0xff]
        %v689 = vld [vmem:[#allocation5 + $0x20] sm:$0xff]
        %v690 = vld [vmem:[#allocation5 + $0x28] sm:$0xff]
        %v691 = vld [vmem:[#allocation5 + $0x30] sm:$0xff]
        %v692 = vld [vmem:[#allocation5 + $0x38] sm:$0xff]
        %v693 = vld [vmem:[%s2] sm:$0xff]
        %v694 = vld [vmem:[%s2 + $0x8] sm:$0xff]
        %v695 = vld [vmem:[%s2 + $0x10] sm:$0xff]
        %v696 = vld [vmem:[%s2 + $0x18] sm:$0x1]
        %v697 = vld [vmem:[%s3] sm:$0xff]
        %v698 = vld [vmem:[%s3 + $0x8] sm:$0xff]
        %v699 = vld [vmem:[%s3 + $0x10] sm:$0xff]
        %v700 = vld [vmem:[%s3 + $0x18] sm:$0x1]
        %vm701 = vcmask 203776
        %v703 = vsel %vm701, %v685, 0
        %v706 = vsel %vm701, %v686, 0
        %v709 = vsel %vm701, %v687, 0
        %v712 = vsel %vm701, %v688, 0
        %v715 = vsel %vm701, %v689, 0
        %v718 = vsel %vm701, %v690, 0
        %v721 = vsel %vm701, %v691, 0
        %v724 = vsel %vm701, %v692, 0
        %vm726 = vcmask 1040384
        %v728 = vsel %vm726, %v700, 0
        %730 = vmatpush.msra.mxu0 0.0
        %731 = vmatpush.msra.mxu0 0.0
        %732 = vmatpush.msra.mxu0 0.0
        %733 = vmatpush.msra.mxu0 0.0
        %734 = vmatpush.msra.mxu0 0.0
        %735 = vmatpush.msra.mxu0 0.0
        %736 = vmatpush.msra.mxu0 0.0
        %737 = vmatpush.msra.mxu0 0.0
        %738 = vmatpush.msra.mxu0 0.0
        %739 = vmatpush.msra.mxu0 0.0
        %740 = vmatpush.msra.mxu0 0.0
        %741 = vmatpush.msra.mxu0 0.0
        %742 = vmatpush.msra.mxu0 %v728
        %743 = vmatpush.msra.mxu0 %v699
        %744 = vmatpush.msra.mxu0 %v698
        %745 = vmatpush.msra.mxu0 %v697
        %746 = vmatmul.f32.gmra.mxu0 %v703
        %v747 = vpop.f32.mrf.mxu0
        %v748 = vadd.f32 0.0, %v747
        %749 = vmatmul.f32.gmra.mxu0 %v706
        %v750 = vpop.f32.mrf.mxu0
        %v751 = vadd.f32 0.0, %v750
        %752 = vmatmul.f32.gmra.mxu0 %v709
        %v753 = vpop.f32.mrf.mxu0
        %v754 = vadd.f32 0.0, %v753
        %755 = vmatmul.f32.gmra.mxu0 %v712
        %v756 = vpop.f32.mrf.mxu0
        %v757 = vadd.f32 0.0, %v756
        %758 = vmatmul.f32.gmra.mxu0 %v715
        %v759 = vpop.f32.mrf.mxu0
        %v760 = vadd.f32 0.0, %v759
        %761 = vmatmul.f32.gmra.mxu0 %v718
        %v762 = vpop.f32.mrf.mxu0
        %v763 = vadd.f32 0.0, %v762
        %764 = vmatmul.f32.gmra.mxu0 %v721
        %v765 = vpop.f32.mrf.mxu0
        %v766 = vadd.f32 0.0, %v765
        %767 = vmatmul.f32.gmra.mxu0 %v724
        %v768 = vpop.f32.mrf.mxu0
        %v769 = vadd.f32 0.0, %v768
        %770 = vdwg.mxu0
        %v772 = vsel %vm701, %v677, 0
        %v775 = vsel %vm701, %v678, 0
        %v778 = vsel %vm701, %v679, 0
        %v781 = vsel %vm701, %v680, 0
        %v784 = vsel %vm701, %v681, 0
        %v787 = vsel %vm701, %v682, 0
        %v790 = vsel %vm701, %v683, 0
        %v793 = vsel %vm701, %v684, 0
        %v796 = vsel %vm726, %v696, 0
        %798 = vmatpush.msra.mxu0 0.0
        %799 = vmatpush.msra.mxu0 0.0
        %800 = vmatpush.msra.mxu0 0.0
        %801 = vmatpush.msra.mxu0 0.0
        %802 = vmatpush.msra.mxu0 0.0
        %803 = vmatpush.msra.mxu0 0.0
        %804 = vmatpush.msra.mxu0 0.0
        %805 = vmatpush.msra.mxu0 0.0
        %806 = vmatpush.msra.mxu0 0.0
        %807 = vmatpush.msra.mxu0 0.0
        %808 = vmatpush.msra.mxu0 0.0
        %809 = vmatpush.msra.mxu0 0.0
        %810 = vmatpush.msra.mxu0 %v796
        %811 = vmatpush.msra.mxu0 %v695
        %812 = vmatpush.msra.mxu0 %v694
        %813 = vmatpush.msra.mxu0 %v693
        %814 = vmatmul.f32.gmra.mxu0 %v772
        %v815 = vpop.f32.mrf.mxu0
        %v816 = vadd.f32 %v748, %v815
        %817 = vmatmul.f32.gmra.mxu0 %v775
        %v818 = vpop.f32.mrf.mxu0
        %v819 = vadd.f32 %v751, %v818
        %820 = vmatmul.f32.gmra.mxu0 %v778
        %v821 = vpop.f32.mrf.mxu0
        %v822 = vadd.f32 %v754, %v821
        %823 = vmatmul.f32.gmra.mxu0 %v781
        %v824 = vpop.f32.mrf.mxu0
        %v825 = vadd.f32 %v757, %v824
        %826 = vmatmul.f32.gmra.mxu0 %v784
        %v827 = vpop.f32.mrf.mxu0
        %v828 = vadd.f32 %v760, %v827
        %829 = vmatmul.f32.gmra.mxu0 %v787
        %v830 = vpop.f32.mrf.mxu0
        %v831 = vadd.f32 %v763, %v830
        %832 = vmatmul.f32.gmra.mxu0 %v790
        %v833 = vpop.f32.mrf.mxu0
        %v834 = vadd.f32 %v766, %v833
        %835 = vmatmul.f32.gmra.mxu0 %v793
        %v836 = vpop.f32.mrf.mxu0
        %v837 = vadd.f32 %v769, %v836
        %838 = vdwg.mxu0
        %s839 = scalar_lea.vmem %s5, 2
        %v840 = vld [vmem:[%s839] sm:$0x1]
        %v842 = vperm.slane %v840, 0
        %v844 = vadd.f32 %v816, %v842
        %v845 = vadd.f32 %v819, %v842
        %v846 = vadd.f32 %v822, %v842
        %v847 = vadd.f32 %v825, %v842
        %v848 = vadd.f32 %v828, %v842
        %v849 = vadd.f32 %v831, %v842
        %v850 = vadd.f32 %v834, %v842
        %v851 = vadd.f32 %v837, %v842
        %852 = vst.msk [vmem:[#allocation2] sm:$0xff] %vm456, %v844
        %853 = vst.msk [vmem:[#allocation2 + $0x8] sm:$0xff] %vm456, %v845
        %854 = vst.msk [vmem:[#allocation2 + $0x10] sm:$0xff] %vm456, %v846
        %855 = vst.msk [vmem:[#allocation2 + $0x18] sm:$0xff] %vm456, %v847
        %856 = vst.msk [vmem:[#allocation2 + $0x20] sm:$0xff] %vm456, %v848
        %857 = vst.msk [vmem:[#allocation2 + $0x28] sm:$0xff] %vm456, %v849
        %858 = vst.msk [vmem:[#allocation2 + $0x30] sm:$0xff] %vm456, %v850
        %859 = vst.msk [vmem:[#allocation2 + $0x38] sm:$0xff] %vm456, %v851
        %s860 = scalar_lea.vmem %s2, 32
        %v861 = vld [vmem:[%s860] sm:$0xff]
        %v862 = vld [vmem:[%s860 + $0x8] sm:$0xff]
        %v863 = vld [vmem:[%s860 + $0x10] sm:$0xff]
        %v864 = vld [vmem:[%s860 + $0x18] sm:$0x1]
        %s865 = scalar_lea.vmem %s3, 32
        %v866 = vld [vmem:[%s865] sm:$0xff]
        %v867 = vld [vmem:[%s865 + $0x8] sm:$0xff]
        %v868 = vld [vmem:[%s865 + $0x10] sm:$0xff]
        %v869 = vld [vmem:[%s865 + $0x18] sm:$0x1]
        %v871 = vsel %vm726, %v869, 0
        %873 = vmatpush.msra.mxu0 0.0
        %874 = vmatpush.msra.mxu0 0.0
        %875 = vmatpush.msra.mxu0 0.0
        %876 = vmatpush.msra.mxu0 0.0
        %877 = vmatpush.msra.mxu0 0.0
        %878 = vmatpush.msra.mxu0 0.0
        %879 = vmatpush.msra.mxu0 0.0
        %880 = vmatpush.msra.mxu0 0.0
        %881 = vmatpush.msra.mxu0 0.0
        %882 = vmatpush.msra.mxu0 0.0
        %883 = vmatpush.msra.mxu0 0.0
        %884 = vmatpush.msra.mxu0 0.0
        %885 = vmatpush.msra.mxu0 %v871
        %886 = vmatpush.msra.mxu0 %v868
        %887 = vmatpush.msra.mxu0 %v867
        %888 = vmatpush.msra.mxu0 %v866
        %889 = vmatmul.f32.gmra.mxu0 %v703
        %v890 = vpop.f32.mrf.mxu0
        %v891 = vadd.f32 0.0, %v890
        %892 = vmatmul.f32.gmra.mxu0 %v706
        %v893 = vpop.f32.mrf.mxu0
        %v894 = vadd.f32 0.0, %v893
        %895 = vmatmul.f32.gmra.mxu0 %v709
        %v896 = vpop.f32.mrf.mxu0
        %v897 = vadd.f32 0.0, %v896
        %898 = vmatmul.f32.gmra.mxu0 %v712
        %v899 = vpop.f32.mrf.mxu0
        %v900 = vadd.f32 0.0, %v899
        %901 = vmatmul.f32.gmra.mxu0 %v715
        %v902 = vpop.f32.mrf.mxu0
        %v903 = vadd.f32 0.0, %v902
        %904 = vmatmul.f32.gmra.mxu0 %v718
        %v905 = vpop.f32.mrf.mxu0
        %v906 = vadd.f32 0.0, %v905
        %907 = vmatmul.f32.gmra.mxu0 %v721
        %v908 = vpop.f32.mrf.mxu0
        %v909 = vadd.f32 0.0, %v908
        %910 = vmatmul.f32.gmra.mxu0 %v724
        %v911 = vpop.f32.mrf.mxu0
        %v912 = vadd.f32 0.0, %v911
        %913 = vdwg.mxu0
        %v915 = vsel %vm726, %v864, 0
        %917 = vmatpush.msra.mxu0 0.0
        %918 = vmatpush.msra.mxu0 0.0
        %919 = vmatpush.msra.mxu0 0.0
        %920 = vmatpush.msra.mxu0 0.0
        %921 = vmatpush.msra.mxu0 0.0
        %922 = vmatpush.msra.mxu0 0.0
        %923 = vmatpush.msra.mxu0 0.0
        %924 = vmatpush.msra.mxu0 0.0
        %925 = vmatpush.msra.mxu0 0.0
        %926 = vmatpush.msra.mxu0 0.0
        %927 = vmatpush.msra.mxu0 0.0
        %928 = vmatpush.msra.mxu0 0.0
        %929 = vmatpush.msra.mxu0 %v915
        %930 = vmatpush.msra.mxu0 %v863
        %931 = vmatpush.msra.mxu0 %v862
        %932 = vmatpush.msra.mxu0 %v861
        %933 = vmatmul.f32.gmra.mxu0 %v772
        %v934 = vpop.f32.mrf.mxu0
        %v935 = vadd.f32 %v891, %v934
        %936 = vmatmul.f32.gmra.mxu0 %v775
        %v937 = vpop.f32.mrf.mxu0
        %v938 = vadd.f32 %v894, %v937
        %939 = vmatmul.f32.gmra.mxu0 %v778
        %v940 = vpop.f32.mrf.mxu0
        %v941 = vadd.f32 %v897, %v940
        %942 = vmatmul.f32.gmra.mxu0 %v781
        %v943 = vpop.f32.mrf.mxu0
        %v944 = vadd.f32 %v900, %v943
        %945 = vmatmul.f32.gmra.mxu0 %v784
        %v946 = vpop.f32.mrf.mxu0
        %v947 = vadd.f32 %v903, %v946
        %948 = vmatmul.f32.gmra.mxu0 %v787
        %v949 = vpop.f32.mrf.mxu0
        %v950 = vadd.f32 %v906, %v949
        %951 = vmatmul.f32.gmra.mxu0 %v790
        %v952 = vpop.f32.mrf.mxu0
        %v953 = vadd.f32 %v909, %v952
        %954 = vmatmul.f32.gmra.mxu0 %v793
        %v955 = vpop.f32.mrf.mxu0
        %v956 = vadd.f32 %v912, %v955
        %957 = vdwg.mxu0
        %s958 = scalar_lea.vmem %s5, 3
        %v959 = vld [vmem:[%s958] sm:$0x1]
        %v961 = vperm.slane %v959, 0
        %v963 = vadd.f32 %v935, %v961
        %v964 = vadd.f32 %v938, %v961
        %v965 = vadd.f32 %v941, %v961
        %v966 = vadd.f32 %v944, %v961
        %v967 = vadd.f32 %v947, %v961
        %v968 = vadd.f32 %v950, %v961
        %v969 = vadd.f32 %v953, %v961
        %v970 = vadd.f32 %v956, %v961
        %971 = vst.msk [vmem:[#allocation3] sm:$0xff] %vm456, %v963
        %972 = vst.msk [vmem:[#allocation3 + $0x8] sm:$0xff] %vm456, %v964
        %973 = vst.msk [vmem:[#allocation3 + $0x10] sm:$0xff] %vm456, %v965
        %974 = vst.msk [vmem:[#allocation3 + $0x18] sm:$0xff] %vm456, %v966
        %975 = vst.msk [vmem:[#allocation3 + $0x20] sm:$0xff] %vm456, %v967
        %976 = vst.msk [vmem:[#allocation3 + $0x28] sm:$0xff] %vm456, %v968
        %977 = vst.msk [vmem:[#allocation3 + $0x30] sm:$0xff] %vm456, %v969
        %978 = vst.msk [vmem:[#allocation3 + $0x38] sm:$0xff] %vm456, %v970
        %s979 = scalar_lea.vmem %s4, 64
        %v980 = vld [vmem:[%s979] sm:$0xff]
        %v981 = vld [vmem:[%s979 + $0x8] sm:$0xff]
        %v982 = vld [vmem:[%s979 + $0x10] sm:$0xff]
        %v983 = vld [vmem:[%s979 + $0x18] sm:$0x1]
        %s984 = scalar_lea.vmem %s4, 96
        %v985 = vld [vmem:[%s984] sm:$0xff]
        %v986 = vld [vmem:[%s984 + $0x8] sm:$0xff]
        %v987 = vld [vmem:[%s984 + $0x10] sm:$0xff]
        %v988 = vld [vmem:[%s984 + $0x18] sm:$0x1]
        loop: start=0, step=1, limit=8
        $region98: #{model_boeck_forward.1} parent=85 // loop_pre_header
          _
        $region99: #{model_boeck_forward.1} parent=85 // loop_header
          %s990 = sphi 0, %s994
          %p991 = scmp.ge.s32.totalorder %s990, 8
          %v995 = vphi 0.0, %v1085
          %v996 = vphi 0.0, %v1079
          %v997 = vphi 0.0, %v1107
          %v998 = vphi 0.0, %v1101
        $region100: #{model_boeck_forward.1} parent=85 // loop_header_branch
          %993 = sbr.rel (%p991) target = $region104
        $region101: #{model_boeck_forward.1} parent=85 // loop_body
          %s999 = smul.u32 %s990, 8
          %s1000 = ssub.s32 7, %s990
          %s1001 = smul.u32 %s1000, 8
          %s1002 = scalar_lea.vmem [#allocation2], %s999
          %v1003 = vld [vmem:[%s1002] sm:$0xff]
          %1005 = vrot.lane.b32.xlu0 %v995, 53
          %v1006 = vpop.permute.xlu0 %1005
          %v1007 = vsel %vm701, %v1006, 0
          %v1010 = vsel %vm726, %v983, 0
          %1012 = vmatpush.msra.mxu0 0.0
          %1013 = vmatpush.msra.mxu0 0.0
          %1014 = vmatpush.msra.mxu0 0.0
          %1015 = vmatpush.msra.mxu0 0.0
          %1016 = vmatpush.msra.mxu0 0.0
          %1017 = vmatpush.msra.mxu0 0.0
          %1018 = vmatpush.msra.mxu0 0.0
          %1019 = vmatpush.msra.mxu0 0.0
          %1020 = vmatpush.msra.mxu0 0.0
          %1021 = vmatpush.msra.mxu0 0.0
          %1022 = vmatpush.msra.mxu0 0.0
          %1023 = vmatpush.msra.mxu0 0.0
          %1024 = vmatpush.msra.mxu0 %v1010
          %1025 = vmatpush.msra.mxu0 %v982
          %1026 = vmatpush.msra.mxu0 %v981
          %1027 = vmatpush.msra.mxu0 %v980
          %1028 = vmatmul.f32.gmra.mxu0 %v1007
          %v1029 = vpop.f32.mrf.mxu0
          %v1030 = vadd.f32 0.0, %v1029
          %1031 = vdwg.mxu0
          %v1032 = vadd.f32 %v1003, %v1030
          %s1033 = scalar_lea.vmem [#allocation3], %s1001
          %v1034 = vld [vmem:[%s1033] sm:$0xff]
          %1036 = vrot.lane.b32.xlu0 %v997, 53
          %v1037 = vpop.permute.xlu0 %1036
          %v1038 = vsel %vm701, %v1037, 0
          %v1041 = vsel %vm726, %v988, 0
          %1043 = vmatpush.msra.mxu0 0.0
          %1044 = vmatpush.msra.mxu0 0.0
          %1045 = vmatpush.msra.mxu0 0.0
          %1046 = vmatpush.msra.mxu0 0.0
          %1047 = vmatpush.msra.mxu0 0.0
          %1048 = vmatpush.msra.mxu0 0.0
          %1049 = vmatpush.msra.mxu0 0.0
          %1050 = vmatpush.msra.mxu0 0.0
          %1051 = vmatpush.msra.mxu0 0.0
          %1052 = vmatpush.msra.mxu0 0.0
          %1053 = vmatpush.msra.mxu0 0.0
          %1054 = vmatpush.msra.mxu0 0.0
          %1055 = vmatpush.msra.mxu0 %v1041
          %1056 = vmatpush.msra.mxu0 %v987
          %1057 = vmatpush.msra.mxu0 %v986
          %1058 = vmatpush.msra.mxu0 %v985
          %1059 = vmatmul.f32.gmra.mxu0 %v1038
          %v1060 = vpop.f32.mrf.mxu0
          %v1061 = vadd.f32 0.0, %v1060
          %1062 = vdwg.mxu0
          %v1063 = vadd.f32 %v1034, %v1061
          %v1064 = vmul.f32 %v1032, 0.5
          %v1065 = vtanh.pop %v1064
          %v1066 = vmul.f32 %v1065, 0.5
          %v1067 = vadd.f32 %v1066, 0.5
          %v1068 = vtanh.pop %v1032
          %v1069 = vmul.f32 %v1067, %v996
          %1071 = vrot.lane.b32.xlu0 %v1068, 78
          %v1072 = vpop.permute.xlu0 %1071
          %v1074 = vmul.f32 %v1067, %v1072
          %1076 = vrot.lane.b32.xlu0 %v1074, 25
          %v1077 = vpop.permute.xlu0 %1076
          %v1079 = vadd.f32 %v1069, %v1077
          %v1080 = vtanh.pop %v1079
          %1082 = vrot.lane.b32.xlu0 %v1080, 50
          %v1083 = vpop.permute.xlu0 %1082
          %v1085 = vmul.f32 %v1067, %v1083
          %v1086 = vmul.f32 %v1063, 0.5
          %v1087 = vtanh.pop %v1086
          %v1088 = vmul.f32 %v1087, 0.5
          %v1089 = vadd.f32 %v1088, 0.5
          %v1090 = vtanh.pop %v1063
          %v1091 = vmul.f32 %v1089, %v998
          %1093 = vrot.lane.b32.xlu0 %v1090, 78
          %v1094 = vpop.permute.xlu0 %1093
          %v1096 = vmul.f32 %v1089, %v1094
          %1098 = vrot.lane.b32.xlu0 %v1096, 25
          %v1099 = vpop.permute.xlu0 %1098
          %v1101 = vadd.f32 %v1091, %v1099
          %v1102 = vtanh.pop %v1101
          %1104 = vrot.lane.b32.xlu0 %v1102, 50
          %v1105 = vpop.permute.xlu0 %1104
          %v1107 = vmul.f32 %v1089, %v1105
          %1109 = vrot.lane.b32.xlu0 %v1085, 53
          %v1110 = vpop.permute.xlu0 %1109
          %s1112 = scalar_lea.vmem [#allocation4], %s999
          %1113 = vst.msk [vmem:[%s1112] sm:$0xff] %vm701, %v1110
          %1115 = vrot.lane.b32.xlu0 %v1107, 53
          %v1116 = vpop.permute.xlu0 %1115
          %s1118 = scalar_lea.vmem [#allocation5], %s1001
          %1119 = vst.msk [vmem:[%s1118] sm:$0xff] %vm701, %v1116
        $region102: #{model_boeck_forward.1} parent=85 // loop_footer
          %s994 = sadd.s32 1, %s990
        $region103: #{model_boeck_forward.1} parent=85 // loop_footer_branch
          %989 = sbr.rel target = $region99
        $region104: #{model_boeck_forward.1} parent=85 // loop_exit
          _
        %v1120 = vld [vmem:[#allocation4] sm:$0xff]
        %v1121 = vld [vmem:[#allocation4 + $0x8] sm:$0xff]
        %v1122 = vld [vmem:[#allocation4 + $0x10] sm:$0xff]
        %v1123 = vld [vmem:[#allocation4 + $0x18] sm:$0xff]
        %v1124 = vld [vmem:[#allocation4 + $0x20] sm:$0xff]
        %v1125 = vld [vmem:[#allocation4 + $0x28] sm:$0xff]
        %v1126 = vld [vmem:[#allocation4 + $0x30] sm:$0xff]
        %v1127 = vld [vmem:[#allocation4 + $0x38] sm:$0xff]
        %v1128 = vld [vmem:[#allocation5] sm:$0xff]
        %v1129 = vld [vmem:[#allocation5 + $0x8] sm:$0xff]
        %v1130 = vld [vmem:[#allocation5 + $0x10] sm:$0xff]
        %v1131 = vld [vmem:[#allocation5 + $0x18] sm:$0xff]
        %v1132 = vld [vmem:[#allocation5 + $0x20] sm:$0xff]
        %v1133 = vld [vmem:[#allocation5 + $0x28] sm:$0xff]
        %v1134 = vld [vmem:[#allocation5 + $0x30] sm:$0xff]
        %v1135 = vld [vmem:[#allocation5 + $0x38] sm:$0xff]
        %s1136 = scalar_lea.vmem %s2, 64
        %v1137 = vld [vmem:[%s1136] sm:$0xff]
        %v1138 = vld [vmem:[%s1136 + $0x8] sm:$0xff]
        %v1139 = vld [vmem:[%s1136 + $0x10] sm:$0xff]
        %v1140 = vld [vmem:[%s1136 + $0x18] sm:$0x1]
        %s1141 = scalar_lea.vmem %s3, 64
        %v1142 = vld [vmem:[%s1141] sm:$0xff]
        %v1143 = vld [vmem:[%s1141 + $0x8] sm:$0xff]
        %v1144 = vld [vmem:[%s1141 + $0x10] sm:$0xff]
        %v1145 = vld [vmem:[%s1141 + $0x18] sm:$0x1]
        %v1147 = vsel %vm701, %v1128, 0
        %v1150 = vsel %vm701, %v1129, 0
        %v1153 = vsel %vm701, %v1130, 0
        %v1156 = vsel %vm701, %v1131, 0
        %v1159 = vsel %vm701, %v1132, 0
        %v1162 = vsel %vm701, %v1133, 0
        %v1165 = vsel %vm701, %v1134, 0
        %v1168 = vsel %vm701, %v1135, 0
        %v1171 = vsel %vm726, %v1145, 0
        %1173 = vmatpush.msra.mxu0 0.0
        %1174 = vmatpush.msra.mxu0 0.0
        %1175 = vmatpush.msra.mxu0 0.0
        %1176 = vmatpush.msra.mxu0 0.0
        %1177 = vmatpush.msra.mxu0 0.0
        %1178 = vmatpush.msra.mxu0 0.0
        %1179 = vmatpush.msra.mxu0 0.0
        %1180 = vmatpush.msra.mxu0 0.0
        %1181 = vmatpush.msra.mxu0 0.0
        %1182 = vmatpush.msra.mxu0 0.0
        %1183 = vmatpush.msra.mxu0 0.0
        %1184 = vmatpush.msra.mxu0 0.0
        %1185 = vmatpush.msra.mxu0 %v1171
        %1186 = vmatpush.msra.mxu0 %v1144
        %1187 = vmatpush.msra.mxu0 %v1143
        %1188 = vmatpush.msra.mxu0 %v1142
        %1189 = vmatmul.f32.gmra.mxu0 %v1147
        %v1190 = vpop.f32.mrf.mxu0
        %v1191 = vadd.f32 0.0, %v1190
        %1192 = vmatmul.f32.gmra.mxu0 %v1150
        %v1193 = vpop.f32.mrf.mxu0
        %v1194 = vadd.f32 0.0, %v1193
        %1195 = vmatmul.f32.gmra.mxu0 %v1153
        %v1196 = vpop.f32.mrf.mxu0
        %v1197 = vadd.f32 0.0, %v1196
        %1198 = vmatmul.f32.gmra.mxu0 %v1156
        %v1199 = vpop.f32.mrf.mxu0
        %v1200 = vadd.f32 0.0, %v1199
        %1201 = vmatmul.f32.gmra.mxu0 %v1159
        %v1202 = vpop.f32.mrf.mxu0
        %v1203 = vadd.f32 0.0, %v1202
        %1204 = vmatmul.f32.gmra.mxu0 %v1162
        %v1205 = vpop.f32.mrf.mxu0
        %v1206 = vadd.f32 0.0, %v1205
        %1207 = vmatmul.f32.gmra.mxu0 %v1165
        %v1208 = vpop.f32.mrf.mxu0
        %v1209 = vadd.f32 0.0, %v1208
        %1210 = vmatmul.f32.gmra.mxu0 %v1168
        %v1211 = vpop.f32.mrf.mxu0
        %v1212 = vadd.f32 0.0, %v1211
        %1213 = vdwg.mxu0
        %v1215 = vsel %vm701, %v1120, 0
        %v1218 = vsel %vm701, %v1121, 0
        %v1221 = vsel %vm701, %v1122, 0
        %v1224 = vsel %vm701, %v1123, 0
        %v1227 = vsel %vm701, %v1124, 0
        %v1230 = vsel %vm701, %v1125, 0
        %v1233 = vsel %vm701, %v1126, 0
        %v1236 = vsel %vm701, %v1127, 0
        %v1239 = vsel %vm726, %v1140, 0
        %1241 = vmatpush.msra.mxu0 0.0
        %1242 = vmatpush.msra.mxu0 0.0
        %1243 = vmatpush.msra.mxu0 0.0
        %1244 = vmatpush.msra.mxu0 0.0
        %1245 = vmatpush.msra.mxu0 0.0
        %1246 = vmatpush.msra.mxu0 0.0
        %1247 = vmatpush.msra.mxu0 0.0
        %1248 = vmatpush.msra.mxu0 0.0
        %1249 = vmatpush.msra.mxu0 0.0
        %1250 = vmatpush.msra.mxu0 0.0
        %1251 = vmatpush.msra.mxu0 0.0
        %1252 = vmatpush.msra.mxu0 0.0
        %1253 = vmatpush.msra.mxu0 %v1239
        %1254 = vmatpush.msra.mxu0 %v1139
        %1255 = vmatpush.msra.mxu0 %v1138
        %1256 = vmatpush.msra.mxu0 %v1137
        %1257 = vmatmul.f32.gmra.mxu0 %v1215
        %v1258 = vpop.f32.mrf.mxu0
        %v1259 = vadd.f32 %v1191, %v1258
        %1260 = vmatmul.f32.gmra.mxu0 %v1218
        %v1261 = vpop.f32.mrf.mxu0
        %v1262 = vadd.f32 %v1194, %v1261
        %1263 = vmatmul.f32.gmra.mxu0 %v1221
        %v1264 = vpop.f32.mrf.mxu0
        %v1265 = vadd.f32 %v1197, %v1264
        %1266 = vmatmul.f32.gmra.mxu0 %v1224
        %v1267 = vpop.f32.mrf.mxu0
        %v1268 = vadd.f32 %v1200, %v1267
        %1269 = vmatmul.f32.gmra.mxu0 %v1227
        %v1270 = vpop.f32.mrf.mxu0
        %v1271 = vadd.f32 %v1203, %v1270
        %1272 = vmatmul.f32.gmra.mxu0 %v1230
        %v1273 = vpop.f32.mrf.mxu0
        %v1274 = vadd.f32 %v1206, %v1273
        %1275 = vmatmul.f32.gmra.mxu0 %v1233
        %v1276 = vpop.f32.mrf.mxu0
        %v1277 = vadd.f32 %v1209, %v1276
        %1278 = vmatmul.f32.gmra.mxu0 %v1236
        %v1279 = vpop.f32.mrf.mxu0
        %v1280 = vadd.f32 %v1212, %v1279
        %1281 = vdwg.mxu0
        %s1282 = scalar_lea.vmem %s5, 4
        %v1283 = vld [vmem:[%s1282] sm:$0x1]
        %v1285 = vperm.slane %v1283, 0
        %v1287 = vadd.f32 %v1259, %v1285
        %v1288 = vadd.f32 %v1262, %v1285
        %v1289 = vadd.f32 %v1265, %v1285
        %v1290 = vadd.f32 %v1268, %v1285
        %v1291 = vadd.f32 %v1271, %v1285
        %v1292 = vadd.f32 %v1274, %v1285
        %v1293 = vadd.f32 %v1277, %v1285
        %v1294 = vadd.f32 %v1280, %v1285
        %1295 = vst.msk [vmem:[#allocation2] sm:$0xff] %vm456, %v1287
        %1296 = vst.msk [vmem:[#allocation2 + $0x8] sm:$0xff] %vm456, %v1288
        %1297 = vst.msk [vmem:[#allocation2 + $0x10] sm:$0xff] %vm456, %v1289
        %1298 = vst.msk [vmem:[#allocation2 + $0x18] sm:$0xff] %vm456, %v1290
        %1299 = vst.msk [vmem:[#allocation2 + $0x20] sm:$0xff] %vm456, %v1291
        %1300 = vst.msk [vmem:[#allocation2 + $0x28] sm:$0xff] %vm456, %v1292
        %1301 = vst.msk [vmem:[#allocation2 + $0x30] sm:$0xff] %vm456, %v1293
        %1302 = vst.msk [vmem:[#allocation2 + $0x38] sm:$0xff] %vm456, %v1294
        %s1303 = scalar_lea.vmem %s2, 96
        %v1304 = vld [vmem:[%s1303] sm:$0xff]
        %v1305 = vld [vmem:[%s1303 + $0x8] sm:$0xff]
        %v1306 = vld [vmem:[%s1303 + $0x10] sm:$0xff]
        %v1307 = vld [vmem:[%s1303 + $0x18] sm:$0x1]
        %s1308 = scalar_lea.vmem %s3, 96
        %v1309 = vld [vmem:[%s1308] sm:$0xff]
        %v1310 = vld [vmem:[%s1308 + $0x8] sm:$0xff]
        %v1311 = vld [vmem:[%s1308 + $0x10] sm:$0xff]
        %v1312 = vld [vmem:[%s1308 + $0x18] sm:$0x1]
        %v1314 = vsel %vm726, %v1312, 0
        %1316 = vmatpush.msra.mxu0 0.0
        %1317 = vmatpush.msra.mxu0 0.0
        %1318 = vmatpush.msra.mxu0 0.0
        %1319 = vmatpush.msra.mxu0 0.0
        %1320 = vmatpush.msra.mxu0 0.0
        %1321 = vmatpush.msra.mxu0 0.0
        %1322 = vmatpush.msra.mxu0 0.0
        %1323 = vmatpush.msra.mxu0 0.0
        %1324 = vmatpush.msra.mxu0 0.0
        %1325 = vmatpush.msra.mxu0 0.0
        %1326 = vmatpush.msra.mxu0 0.0
        %1327 = vmatpush.msra.mxu0 0.0
        %1328 = vmatpush.msra.mxu0 %v1314
        %1329 = vmatpush.msra.mxu0 %v1311
        %1330 = vmatpush.msra.mxu0 %v1310
        %1331 = vmatpush.msra.mxu0 %v1309
        %1332 = vmatmul.f32.gmra.mxu0 %v1147
        %v1333 = vpop.f32.mrf.mxu0
        %v1334 = vadd.f32 0.0, %v1333
        %1335 = vmatmul.f32.gmra.mxu0 %v1150
        %v1336 = vpop.f32.mrf.mxu0
        %v1337 = vadd.f32 0.0, %v1336
        %1338 = vmatmul.f32.gmra.mxu0 %v1153
        %v1339 = vpop.f32.mrf.mxu0
        %v1340 = vadd.f32 0.0, %v1339
        %1341 = vmatmul.f32.gmra.mxu0 %v1156
        %v1342 = vpop.f32.mrf.mxu0
        %v1343 = vadd.f32 0.0, %v1342
        %1344 = vmatmul.f32.gmra.mxu0 %v1159
        %v1345 = vpop.f32.mrf.mxu0
        %v1346 = vadd.f32 0.0, %v1345
        %1347 = vmatmul.f32.gmra.mxu0 %v1162
        %v1348 = vpop.f32.mrf.mxu0
        %v1349 = vadd.f32 0.0, %v1348
        %1350 = vmatmul.f32.gmra.mxu0 %v1165
        %v1351 = vpop.f32.mrf.mxu0
        %v1352 = vadd.f32 0.0, %v1351
        %1353 = vmatmul.f32.gmra.mxu0 %v1168
        %v1354 = vpop.f32.mrf.mxu0
        %v1355 = vadd.f32 0.0, %v1354
        %1356 = vdwg.mxu0
        %v1358 = vsel %vm726, %v1307, 0
        %1360 = vmatpush.msra.mxu0 0.0
        %1361 = vmatpush.msra.mxu0 0.0
        %1362 = vmatpush.msra.mxu0 0.0
        %1363 = vmatpush.msra.mxu0 0.0
        %1364 = vmatpush.msra.mxu0 0.0
        %1365 = vmatpush.msra.mxu0 0.0
        %1366 = vmatpush.msra.mxu0 0.0
        %1367 = vmatpush.msra.mxu0 0.0
        %1368 = vmatpush.msra.mxu0 0.0
        %1369 = vmatpush.msra.mxu0 0.0
        %1370 = vmatpush.msra.mxu0 0.0
        %1371 = vmatpush.msra.mxu0 0.0
        %1372 = vmatpush.msra.mxu0 %v1358
        %1373 = vmatpush.msra.mxu0 %v1306
        %1374 = vmatpush.msra.mxu0 %v1305
        %1375 = vmatpush.msra.mxu0 %v1304
        %1376 = vmatmul.f32.gmra.mxu0 %v1215
        %v1377 = vpop.f32.mrf.mxu0
        %v1378 = vadd.f32 %v1334, %v1377
        %1379 = vmatmul.f32.gmra.mxu0 %v1218
        %v1380 = vpop.f32.mrf.mxu0
        %v1381 = vadd.f32 %v1337, %v1380
        %1382 = vmatmul.f32.gmra.mxu0 %v1221
        %v1383 = vpop.f32.mrf.mxu0
        %v1384 = vadd.f32 %v1340, %v1383
        %1385 = vmatmul.f32.gmra.mxu0 %v1224
        %v1386 = vpop.f32.mrf.mxu0
        %v1387 = vadd.f32 %v1343, %v1386
        %1388 = vmatmul.f32.gmra.mxu0 %v1227
        %v1389 = vpop.f32.mrf.mxu0
        %v1390 = vadd.f32 %v1346, %v1389
        %1391 = vmatmul.f32.gmra.mxu0 %v1230
        %v1392 = vpop.f32.mrf.mxu0
        %v1393 = vadd.f32 %v1349, %v1392
        %1394 = vmatmul.f32.gmra.mxu0 %v1233
        %v1395 = vpop.f32.mrf.mxu0
        %v1396 = vadd.f32 %v1352, %v1395
        %1397 = vmatmul.f32.gmra.mxu0 %v1236
        %v1398 = vpop.f32.mrf.mxu0
        %v1399 = vadd.f32 %v1355, %v1398
        %1400 = vdwg.mxu0
        %s1401 = scalar_lea.vmem %s5, 5
        %v1402 = vld [vmem:[%s1401] sm:$0x1]
        %v1404 = vperm.slane %v1402, 0
        %v1406 = vadd.f32 %v1378, %v1404
        %v1407 = vadd.f32 %v1381, %v1404
        %v1408 = vadd.f32 %v1384, %v1404
        %v1409 = vadd.f32 %v1387, %v1404
        %v1410 = vadd.f32 %v1390, %v1404
        %v1411 = vadd.f32 %v1393, %v1404
        %v1412 = vadd.f32 %v1396, %v1404
        %v1413 = vadd.f32 %v1399, %v1404
        %1414 = vst.msk [vmem:[#allocation3] sm:$0xff] %vm456, %v1406
        %1415 = vst.msk [vmem:[#allocation3 + $0x8] sm:$0xff] %vm456, %v1407
        %1416 = vst.msk [vmem:[#allocation3 + $0x10] sm:$0xff] %vm456, %v1408
        %1417 = vst.msk [vmem:[#allocation3 + $0x18] sm:$0xff] %vm456, %v1409
        %1418 = vst.msk [vmem:[#allocation3 + $0x20] sm:$0xff] %vm456, %v1410
        %1419 = vst.msk [vmem:[#allocation3 + $0x28] sm:$0xff] %vm456, %v1411
        %1420 = vst.msk [vmem:[#allocation3 + $0x30] sm:$0xff] %vm456, %v1412
        %1421 = vst.msk [vmem:[#allocation3 + $0x38] sm:$0xff] %vm456, %v1413
        %s1422 = scalar_lea.vmem %s4, 128
        %v1423 = vld [vmem:[%s1422] sm:$0xff]
        %v1424 = vld [vmem:[%s1422 + $0x8] sm:$0xff]
        %v1425 = vld [vmem:[%s1422 + $0x10] sm:$0xff]
        %v1426 = vld [vmem:[%s1422 + $0x18] sm:$0x1]
        %s1427 = scalar_lea.vmem %s4, 160
        %v1428 = vld [vmem:[%s1427] sm:$0xff]
        %v1429 = vld [vmem:[%s1427 + $0x8] sm:$0xff]
        %v1430 = vld [vmem:[%s1427 + $0x10] sm:$0xff]
        %v1431 = vld [vmem:[%s1427 + $0x18] sm:$0x1]
        loop: start=0, step=1, limit=8
        $region105: #{model_boeck_forward.1} parent=85 // loop_pre_header
          _
        $region106: #{model_boeck_forward.1} parent=85 // loop_header
          %s1433 = sphi 0, %s1437
          %p1434 = scmp.ge.s32.totalorder %s1433, 8
          %v1438 = vphi 0.0, %v1528
          %v1439 = vphi 0.0, %v1522
          %v1440 = vphi 0.0, %v1550
          %v1441 = vphi 0.0, %v1544
        $region107: #{model_boeck_forward.1} parent=85 // loop_header_branch
          %1436 = sbr.rel (%p1434) target = $region111
        $region108: #{model_boeck_forward.1} parent=85 // loop_body
          %s1442 = smul.u32 %s1433, 8
          %s1443 = ssub.s32 7, %s1433
          %s1444 = smul.u32 %s1443, 8
          %s1445 = scalar_lea.vmem [#allocation2], %s1442
          %v1446 = vld [vmem:[%s1445] sm:$0xff]
          %1448 = vrot.lane.b32.xlu0 %v1438, 53
          %v1449 = vpop.permute.xlu0 %1448
          %v1450 = vsel %vm701, %v1449, 0
          %v1453 = vsel %vm726, %v1426, 0
          %1455 = vmatpush.msra.mxu0 0.0
          %1456 = vmatpush.msra.mxu0 0.0
          %1457 = vmatpush.msra.mxu0 0.0
          %1458 = vmatpush.msra.mxu0 0.0
          %1459 = vmatpush.msra.mxu0 0.0
          %1460 = vmatpush.msra.mxu0 0.0
          %1461 = vmatpush.msra.mxu0 0.0
          %1462 = vmatpush.msra.mxu0 0.0
          %1463 = vmatpush.msra.mxu0 0.0
          %1464 = vmatpush.msra.mxu0 0.0
          %1465 = vmatpush.msra.mxu0 0.0
          %1466 = vmatpush.msra.mxu0 0.0
          %1467 = vmatpush.msra.mxu0 %v1453
          %1468 = vmatpush.msra.mxu0 %v1425
          %1469 = vmatpush.msra.mxu0 %v1424
          %1470 = vmatpush.msra.mxu0 %v1423
          %1471 = vmatmul.f32.gmra.mxu0 %v1450
          %v1472 = vpop.f32.mrf.mxu0
          %v1473 = vadd.f32 0.0, %v1472
          %1474 = vdwg.mxu0
          %v1475 = vadd.f32 %v1446, %v1473
          %s1476 = scalar_lea.vmem [#allocation3], %s1444
          %v1477 = vld [vmem:[%s1476] sm:$0xff]
          %1479 = vrot.lane.b32.xlu0 %v1440, 53
          %v1480 = vpop.permute.xlu0 %1479
          %v1481 = vsel %vm701, %v1480, 0
          %v1484 = vsel %vm726, %v1431, 0
          %1486 = vmatpush.msra.mxu0 0.0
          %1487 = vmatpush.msra.mxu0 0.0
          %1488 = vmatpush.msra.mxu0 0.0
          %1489 = vmatpush.msra.mxu0 0.0
          %1490 = vmatpush.msra.mxu0 0.0
          %1491 = vmatpush.msra.mxu0 0.0
          %1492 = vmatpush.msra.mxu0 0.0
          %1493 = vmatpush.msra.mxu0 0.0
          %1494 = vmatpush.msra.mxu0 0.0
          %1495 = vmatpush.msra.mxu0 0.0
          %1496 = vmatpush.msra.mxu0 0.0
          %1497 = vmatpush.msra.mxu0 0.0
          %1498 = vmatpush.msra.mxu0 %v1484
          %1499 = vmatpush.msra.mxu0 %v1430
          %1500 = vmatpush.msra.mxu0 %v1429
          %1501 = vmatpush.msra.mxu0 %v1428
          %1502 = vmatmul.f32.gmra.mxu0 %v1481
          %v1503 = vpop.f32.mrf.mxu0
          %v1504 = vadd.f32 0.0, %v1503
          %1505 = vdwg.mxu0
          %v1506 = vadd.f32 %v1477, %v1504
          %v1507 = vmul.f32 %v1475, 0.5
          %v1508 = vtanh.pop %v1507
          %v1509 = vmul.f32 %v1508, 0.5
          %v1510 = vadd.f32 %v1509, 0.5
          %v1511 = vtanh.pop %v1475
          %v1512 = vmul.f32 %v1510, %v1439
          %1514 = vrot.lane.b32.xlu0 %v1511, 78
          %v1515 = vpop.permute.xlu0 %1514
          %v1517 = vmul.f32 %v1510, %v1515
          %1519 = vrot.lane.b32.xlu0 %v1517, 25
          %v1520 = vpop.permute.xlu0 %1519
          %v1522 = vadd.f32 %v1512, %v1520
          %v1523 = vtanh.pop %v1522
          %1525 = vrot.lane.b32.xlu0 %v1523, 50
          %v1526 = vpop.permute.xlu0 %1525
          %v1528 = vmul.f32 %v1510, %v1526
          %v1529 = vmul.f32 %v1506, 0.5
          %v1530 = vtanh.pop %v1529
          %v1531 = vmul.f32 %v1530, 0.5
          %v1532 = vadd.f32 %v1531, 0.5
          %v1533 = vtanh.pop %v1506
          %v1534 = vmul.f32 %v1532, %v1441
          %1536 = vrot.lane.b32.xlu0 %v1533, 78
          %v1537 = vpop.permute.xlu0 %1536
          %v1539 = vmul.f32 %v1532, %v1537
          %1541 = vrot.lane.b32.xlu0 %v1539, 25
          %v1542 = vpop.permute.xlu0 %1541
          %v1544 = vadd.f32 %v1534, %v1542
          %v1545 = vtanh.pop %v1544
          %1547 = vrot.lane.b32.xlu0 %v1545, 50
          %v1548 = vpop.permute.xlu0 %1547
          %v1550 = vmul.f32 %v1532, %v1548
          %1552 = vrot.lane.b32.xlu0 %v1528, 53
          %v1553 = vpop.permute.xlu0 %1552
          %s1555 = scalar_lea.vmem [#allocation4], %s1442
          %1556 = vst.msk [vmem:[%s1555] sm:$0xff] %vm701, %v1553
          %1558 = vrot.lane.b32.xlu0 %v1550, 53
          %v1559 = vpop.permute.xlu0 %1558
          %s1561 = scalar_lea.vmem [#allocation5], %s1444
          %1562 = vst.msk [vmem:[%s1561] sm:$0xff] %vm701, %v1559
        $region109: #{model_boeck_forward.1} parent=85 // loop_footer
          %s1437 = sadd.s32 1, %s1433
        $region110: #{model_boeck_forward.1} parent=85 // loop_footer_branch
          %1432 = sbr.rel target = $region106
        $region111: #{model_boeck_forward.1} parent=85 // loop_exit
          _
        %v1563 = vld [vmem:[#allocation4] sm:$0xff]
        %v1564 = vld [vmem:[#allocation4 + $0x8] sm:$0xff]
        %v1565 = vld [vmem:[#allocation4 + $0x10] sm:$0xff]
        %v1566 = vld [vmem:[#allocation4 + $0x18] sm:$0xff]
        %v1567 = vld [vmem:[#allocation4 + $0x20] sm:$0xff]
        %v1568 = vld [vmem:[#allocation4 + $0x28] sm:$0xff]
        %v1569 = vld [vmem:[#allocation4 + $0x30] sm:$0xff]
        %v1570 = vld [vmem:[#allocation4 + $0x38] sm:$0xff]
        %v1571 = vld [vmem:[%s6] sm:$0xff]
        %v1572 = vld [vmem:[%s6 + $0x8] sm:$0xff]
        %v1573 = vld [vmem:[%s6 + $0x10] sm:$0xff]
        %v1574 = vld [vmem:[%s6 + $0x18] sm:$0x1]
        %v1575 = vld [vmem:[#allocation5] sm:$0xff]
        %v1576 = vld [vmem:[#allocation5 + $0x8] sm:$0xff]
        %v1577 = vld [vmem:[#allocation5 + $0x10] sm:$0xff]
        %v1578 = vld [vmem:[#allocation5 + $0x18] sm:$0xff]
        %v1579 = vld [vmem:[#allocation5 + $0x20] sm:$0xff]
        %v1580 = vld [vmem:[#allocation5 + $0x28] sm:$0xff]
        %v1581 = vld [vmem:[#allocation5 + $0x30] sm:$0xff]
        %v1582 = vld [vmem:[#allocation5 + $0x38] sm:$0xff]
        %s1583 = scalar_lea.vmem %s6, 32
        %v1584 = vld [vmem:[%s1583] sm:$0xff]
        %v1585 = vld [vmem:[%s1583 + $0x8] sm:$0xff]
        %v1586 = vld [vmem:[%s1583 + $0x10] sm:$0xff]
        %v1587 = vld [vmem:[%s1583 + $0x18] sm:$0x1]
        %v1589 = vsel %vm701, %v1575, 0
        %v1592 = vsel %vm701, %v1576, 0
        %v1595 = vsel %vm701, %v1577, 0
        %v1598 = vsel %vm701, %v1578, 0
        %v1601 = vsel %vm701, %v1579, 0
        %v1604 = vsel %vm701, %v1580, 0
        %v1607 = vsel %vm701, %v1581, 0
        %v1610 = vsel %vm701, %v1582, 0
        %v1613 = vsel %vm726, %v1587, 0
        %1615 = vmatpush.msra.mxu0 0.0
        %1616 = vmatpush.msra.mxu0 0.0
        %1617 = vmatpush.msra.mxu0 0.0
        %1618 = vmatpush.msra.mxu0 0.0
        %1619 = vmatpush.msra.mxu0 0.0
        %1620 = vmatpush.msra.mxu0 0.0
        %1621 = vmatpush.msra.mxu0 0.0
        %1622 = vmatpush.msra.mxu0 0.0
        %1623 = vmatpush.msra.mxu0 0.0
        %1624 = vmatpush.msra.mxu0 0.0
        %1625 = vmatpush.msra.mxu0 0.0
        %1626 = vmatpush.msra.mxu0 0.0
        %1627 = vmatpush.msra.mxu0 %v1613
        %1628 = vmatpush.msra.mxu0 %v1586
        %1629 = vmatpush.msra.mxu0 %v1585
        %1630 = vmatpush.msra.mxu0 %v1584
        %1631 = vmatmul.f32.gmra.mxu0 %v1589
        %v1632 = vpop.f32.mrf.mxu0
        %v1633 = vadd.f32 0.0, %v1632
        %1634 = vmatmul.f32.gmra.mxu0 %v1592
        %v1635 = vpop.f32.mrf.mxu0
        %v1636 = vadd.f32 0.0, %v1635
        %1637 = vmatmul.f32.gmra.mxu0 %v1595
        %v1638 = vpop.f32.mrf.mxu0
        %v1639 = vadd.f32 0.0, %v1638
        %1640 = vmatmul.f32.gmra.mxu0 %v1598
        %v1641 = vpop.f32.mrf.mxu0
        %v1642 = vadd.f32 0.0, %v1641
        %1643 = vmatmul.f32.gmra.mxu0 %v1601
        %v1644 = vpop.f32.mrf.mxu0
        %v1645 = vadd.f32 0.0, %v1644
        %1646 = vmatmul.f32.gmra.mxu0 %v1604
        %v1647 = vpop.f32.mrf.mxu0
        %v1648 = vadd.f32 0.0, %v1647
        %1649 = vmatmul.f32.gmra.mxu0 %v1607
        %v1650 = vpop.f32.mrf.mxu0
        %v1651 = vadd.f32 0.0, %v1650
        %1652 = vmatmul.f32.gmra.mxu0 %v1610
        %v1653 = vpop.f32.mrf.mxu0
        %v1654 = vadd.f32 0.0, %v1653
        %1655 = vdwg.mxu0
        %v1657 = vsel %vm701, %v1563, 0
        %v1660 = vsel %vm701, %v1564, 0
        %v1663 = vsel %vm701, %v1565, 0
        %v1666 = vsel %vm701, %v1566, 0
        %v1669 = vsel %vm701, %v1567, 0
        %v1672 = vsel %vm701, %v1568, 0
        %v1675 = vsel %vm701, %v1569, 0
        %v1678 = vsel %vm701, %v1570, 0
        %v1681 = vsel %vm726, %v1574, 0
        %1683 = vmatpush.msra.mxu0 0.0
        %1684 = vmatpush.msra.mxu0 0.0
        %1685 = vmatpush.msra.mxu0 0.0
        %1686 = vmatpush.msra.mxu0 0.0
        %1687 = vmatpush.msra.mxu0 0.0
        %1688 = vmatpush.msra.mxu0 0.0
        %1689 = vmatpush.msra.mxu0 0.0
        %1690 = vmatpush.msra.mxu0 0.0
        %1691 = vmatpush.msra.mxu0 0.0
        %1692 = vmatpush.msra.mxu0 0.0
        %1693 = vmatpush.msra.mxu0 0.0
        %1694 = vmatpush.msra.mxu0 0.0
        %1695 = vmatpush.msra.mxu0 %v1681
        %1696 = vmatpush.msra.mxu0 %v1573
        %1697 = vmatpush.msra.mxu0 %v1572
        %1698 = vmatpush.msra.mxu0 %v1571
        %1699 = vmatmul.f32.gmra.mxu0 %v1657
        %v1700 = vpop.f32.mrf.mxu0
        %v1701 = vadd.f32 %v1633, %v1700
        %1702 = vmatmul.f32.gmra.mxu0 %v1660
        %v1703 = vpop.f32.mrf.mxu0
        %v1704 = vadd.f32 %v1636, %v1703
        %1705 = vmatmul.f32.gmra.mxu0 %v1663
        %v1706 = vpop.f32.mrf.mxu0
        %v1707 = vadd.f32 %v1639, %v1706
        %1708 = vmatmul.f32.gmra.mxu0 %v1666
        %v1709 = vpop.f32.mrf.mxu0
        %v1710 = vadd.f32 %v1642, %v1709
        %1711 = vmatmul.f32.gmra.mxu0 %v1669
        %v1712 = vpop.f32.mrf.mxu0
        %v1713 = vadd.f32 %v1645, %v1712
        %1714 = vmatmul.f32.gmra.mxu0 %v1672
        %v1715 = vpop.f32.mrf.mxu0
        %v1716 = vadd.f32 %v1648, %v1715
        %1717 = vmatmul.f32.gmra.mxu0 %v1675
        %v1718 = vpop.f32.mrf.mxu0
        %v1719 = vadd.f32 %v1651, %v1718
        %1720 = vmatmul.f32.gmra.mxu0 %v1678
        %v1721 = vpop.f32.mrf.mxu0
        %v1722 = vadd.f32 %v1654, %v1721
        %1723 = vdwg.mxu0
        %v1724 = vld [vmem:[%s7] sm:$0x1]
        %v1726 = vperm.slane %v1724, 0
        %v1728 = vadd.f32 %v1701, %v1726
        %v1729 = vadd.f32 %v1704, %v1726
        %v1730 = vadd.f32 %v1707, %v1726
        %v1731 = vadd.f32 %v1710, %v1726
        %v1732 = vadd.f32 %v1713, %v1726
        %v1733 = vadd.f32 %v1716, %v1726
        %v1734 = vadd.f32 %v1719, %v1726
        %v1735 = vadd.f32 %v1722, %v1726
        %vm1736 = vcmask 15360
        %v1737 = vsel %vm1736, %v1728, -inf
        %1738 = vmax.xlane.f32.xlu0 %v1737
        %v1739 = vpop.xlane.xlu0 %1738
        %v1740 = vsel %vm1736, %v1729, -inf
        %1741 = vmax.xlane.f32.xlu0 %v1740
        %v1742 = vpop.xlane.xlu0 %1741
        %v1743 = vsel %vm1736, %v1730, -inf
        %1744 = vmax.xlane.f32.xlu0 %v1743
        %v1745 = vpop.xlane.xlu0 %1744
        %v1746 = vsel %vm1736, %v1731, -inf
        %1747 = vmax.xlane.f32.xlu0 %v1746
        %v1748 = vpop.xlane.xlu0 %1747
        %v1749 = vsel %vm1736, %v1732, -inf
        %1750 = vmax.xlane.f32.xlu0 %v1749
        %v1751 = vpop.xlane.xlu0 %1750
        %v1752 = vsel %vm1736, %v1733, -inf
        %1753 = vmax.xlane.f32.xlu0 %v1752
        %v1754 = vpop.xlane.xlu0 %1753
        %v1755 = vsel %vm1736, %v1734, -inf
        %1756 = vmax.xlane.f32.xlu0 %v1755
        %v1757 = vpop.xlane.xlu0 %1756
        %v1758 = vsel %vm1736, %v1735, -inf
        %1759 = vmax.xlane.f32.xlu0 %v1758
        %v1760 = vpop.xlane.xlu0 %1759
        %v1761 = vsub.f32 %v1728, %v1739
        %v1762 = vsub.f32 %v1729, %v1742
        %v1763 = vsub.f32 %v1730, %v1745
        %v1764 = vsub.f32 %v1731, %v1748
        %v1765 = vsub.f32 %v1732, %v1751
        %v1766 = vsub.f32 %v1733, %v1754
        %v1767 = vsub.f32 %v1734, %v1757
        %v1768 = vsub.f32 %v1735, %v1760
        %v1769 = vmul.f32 %v1761, 1.442695
        %v1770 = vpow.pop %v1769
        %v1771 = vmul.f32 %v1762, 1.442695
        %v1772 = vpow.pop %v1771
        %v1773 = vmul.f32 %v1763, 1.442695
        %v1774 = vpow.pop %v1773
        %v1775 = vmul.f32 %v1764, 1.442695
        %v1776 = vpow.pop %v1775
        %v1777 = vmul.f32 %v1765, 1.442695
        %v1778 = vpow.pop %v1777
        %v1779 = vmul.f32 %v1766, 1.442695
        %v1780 = vpow.pop %v1779
        %v1781 = vmul.f32 %v1767, 1.442695
        %v1782 = vpow.pop %v1781
        %v1783 = vmul.f32 %v1768, 1.442695
        %v1784 = vpow.pop %v1783
        %v1785 = vsel %vm1736, %v1770, 0.0
        %1786 = vadd.xlane.f32.xlu0 %v1785
        %v1787 = vpop.xlane.xlu0 %1786
        %v1788 = vsel %vm1736, %v1772, 0.0
        %1789 = vadd.xlane.f32.xlu0 %v1788
        %v1790 = vpop.xlane.xlu0 %1789
        %v1791 = vsel %vm1736, %v1774, 0.0
        %1792 = vadd.xlane.f32.xlu0 %v1791
        %v1793 = vpop.xlane.xlu0 %1792
        %v1794 = vsel %vm1736, %v1776, 0.0
        %1795 = vadd.xlane.f32.xlu0 %v1794
        %v1796 = vpop.xlane.xlu0 %1795
        %v1797 = vsel %vm1736, %v1778, 0.0
        %1798 = vadd.xlane.f32.xlu0 %v1797
        %v1799 = vpop.xlane.xlu0 %1798
        %v1800 = vsel %vm1736, %v1780, 0.0
        %1801 = vadd.xlane.f32.xlu0 %v1800
        %v1802 = vpop.xlane.xlu0 %1801
        %v1803 = vsel %vm1736, %v1782, 0.0
        %1804 = vadd.xlane.f32.xlu0 %v1803
        %v1805 = vpop.xlane.xlu0 %1804
        %v1806 = vsel %vm1736, %v1784, 0.0
        %1807 = vadd.xlane.f32.xlu0 %v1806
        %v1808 = vpop.xlane.xlu0 %1807
        %v1809 = vlog2.pop %v1787
        %v1810 = vmul.f32 %v1809, 0.6931472
        %v1811 = vlog2.pop %v1790
        %v1812 = vmul.f32 %v1811, 0.6931472
        %v1813 = vlog2.pop %v1793
        %v1814 = vmul.f32 %v1813, 0.6931472
        %v1815 = vlog2.pop %v1796
        %v1816 = vmul.f32 %v1815, 0.6931472
        %v1817 = vlog2.pop %v1799
        %v1818 = vmul.f32 %v1817, 0.6931472
        %v1819 = vlog2.pop %v1802
        %v1820 = vmul.f32 %v1819, 0.6931472
        %v1821 = vlog2.pop %v1805
        %v1822 = vmul.f32 %v1821, 0.6931472
        %v1823 = vlog2.pop %v1808
        %v1824 = vmul.f32 %v1823, 0.6931472
        %v1825 = vsub.f32 %v1761, %v1810
        %v1826 = vsub.f32 %v1762, %v1812
        %v1827 = vsub.f32 %v1763, %v1814
        %v1828 = vsub.f32 %v1764, %v1816
        %v1829 = vsub.f32 %v1765, %v1818
        %v1830 = vsub.f32 %v1766, %v1820
        %v1831 = vsub.f32 %v1767, %v1822
        %v1832 = vsub.f32 %v1768, %v1824
        %1833 = vst.msk [vmem:[%s362] sm:$0xff] %vm1736, %v1825
        %1834 = vst.msk [vmem:[%s362 + $0x8] sm:$0xff] %vm1736, %v1826
        %1835 = vst.msk [vmem:[%s362 + $0x10] sm:$0xff] %vm1736, %v1827
        %1836 = vst.msk [vmem:[%s362 + $0x18] sm:$0xff] %vm1736, %v1828
        %1837 = vst.msk [vmem:[%s362 + $0x20] sm:$0xff] %vm1736, %v1829
        %1838 = vst.msk [vmem:[%s362 + $0x28] sm:$0xff] %vm1736, %v1830
        %1839 = vst.msk [vmem:[%s362 + $0x30] sm:$0xff] %vm1736, %v1831
        %1840 = vst.msk [vmem:[%s362 + $0x38] sm:$0xff] %vm1736, %v1832
        %s1841 = sand.u32 %s200, 1
        %s1842 = sand.u32 %s200, 1
        %s1843 = smul.addr %s1842, 64
        %s1844 = scalar_lea.vmem [#allocation7], %s1843
        // Predicated region
        $region112: #{model_boeck_forward.1} parent=85 // pred_check
          %p1845 = pneg %p210
        $region113: #{model_boeck_forward.1} parent=85 // pred_check_branch
          %1847 = sbr.rel (%p1845) target = $region115
        $region114: #{model_boeck_forward.1} parent=85 // pred_region
          %s1848 = smul.addr %s19, 8
          %s1849 = scalar_lea.vmem %s8, %s1848
          // Predicated region
          $region116: #{model_boeck_forward.1} parent=114 // pred_check
            _
          $region117: #{model_boeck_forward.1} parent=114 // pred_check_branch
            %1851 = sbr.rel (0) target = $region119
          $region118: #{model_boeck_forward.1} parent=114 // pred_region
            // Predicated region
            $region120: #{model_boeck_forward.1} parent=118 // pred_check
              _
            $region121: #{model_boeck_forward.1} parent=118 // pred_check_branch
              %1853 = sbr.rel (0) target = $region123
            $region122: #{model_boeck_forward.1} parent=118 // pred_region
              // Predicated region
              $region135: #{model_boeck_forward.1} parent=122 // pred_check
                _
              $region136: #{model_boeck_forward.1} parent=122 // pred_check_branch
                %1883 = sbr.rel (0) target = $region138
              $region137: #{model_boeck_forward.1} parent=122 // pred_region
                loop: start=0, step=1, limit=1
                $region139: #{model_boeck_forward.1} parent=137 // loop_pre_header
                  _
                $region140: #{model_boeck_forward.1} parent=137 // loop_header
                  %s1885 = sphi 0, %s1889
                  %p1886 = scmp.ge.s32.totalorder %s1885, 1
                  %s1890 = sphi %s1844, %s1844
                  %s1891 = sphi %s1849, %s1849
                $region141: #{model_boeck_forward.1} parent=137 // loop_header_branch
                  %1888 = sbr.rel (%p1886) target = $region145
                $region142: #{model_boeck_forward.1} parent=137 // loop_body
                  %v1892 = vld [vmem:[%s1890] sm:$0xff]
                  %1893 = vst [vmem:[%s1891] sm:$0xff] %v1892
                  %v1894 = vld [vmem:[%s1890 + $0x8] sm:$0xff]
                  %1895 = vst [vmem:[%s1891 + $0x10] sm:$0xff] %v1894
                  %v1896 = vld [vmem:[%s1890 + $0x10] sm:$0xff]
                  %1897 = vst [vmem:[%s1891 + $0x20] sm:$0xff] %v1896
                  %v1898 = vld [vmem:[%s1890 + $0x18] sm:$0xff]
                  %1899 = vst [vmem:[%s1891 + $0x30] sm:$0xff] %v1898
                  %v1900 = vld [vmem:[%s1890 + $0x20] sm:$0xff]
                  %1901 = vst [vmem:[%s1891 + $0x40] sm:$0xff] %v1900
                  %v1902 = vld [vmem:[%s1890 + $0x28] sm:$0xff]
                  %1903 = vst [vmem:[%s1891 + $0x50] sm:$0xff] %v1902
                  %v1904 = vld [vmem:[%s1890 + $0x30] sm:$0xff]
                  %1905 = vst [vmem:[%s1891 + $0x60] sm:$0xff] %v1904
                  %v1906 = vld [vmem:[%s1890 + $0x38] sm:$0xff]
                  %1907 = vst [vmem:[%s1891 + $0x70] sm:$0xff] %v1906
                $region143: #{model_boeck_forward.1} parent=137 // loop_footer
                  %s1889 = sadd.s32 1, %s1885
                $region144: #{model_boeck_forward.1} parent=137 // loop_footer_branch
                  %1884 = sbr.rel target = $region140
                $region145: #{model_boeck_forward.1} parent=137 // loop_exit
                  _
              $region138: #{model_boeck_forward.1} parent=122 // pred_fallthru
                _
              // Predicated region
              $region146: #{model_boeck_forward.1} parent=122 // pred_check
                _
              $region147: #{model_boeck_forward.1} parent=122 // pred_check_branch
                %1909 = sbr.rel target = $region149
              $region148: #{model_boeck_forward.1} parent=122 // pred_region
                _
              $region149: #{model_boeck_forward.1} parent=122 // pred_fallthru
                _
            $region123: #{model_boeck_forward.1} parent=118 // pred_fallthru
              _
            // Predicated region
            $region124: #{model_boeck_forward.1} parent=118 // pred_check
              _
            $region125: #{model_boeck_forward.1} parent=118 // pred_check_branch
              %1855 = sbr.rel target = $region127
            $region126: #{model_boeck_forward.1} parent=118 // pred_region
              %s1857 = ssub.s32 256, 1
              loop: start=0, step=1, limit=1
              $region128: #{model_boeck_forward.1} parent=126 // loop_pre_header
                _
              $region129: #{model_boeck_forward.1} parent=126 // loop_header
                %s1859 = sphi 0, %s1863
                %p1860 = scmp.ge.s32.totalorder %s1859, 1
                %s1864 = sphi %s1844, %s1844
                %s1865 = sphi %s1849, %s1849
              $region130: #{model_boeck_forward.1} parent=126 // loop_header_branch
                %1862 = sbr.rel (%p1860) target = $region134
              $region131: #{model_boeck_forward.1} parent=126 // loop_body
                %v1866 = vld [vmem:[%s1864] sm:%s1857]
                %1867 = vst [vmem:[%s1865] sm:%s1857] %v1866
                %v1868 = vld [vmem:[%s1864 + $0x8] sm:%s1857]
                %1869 = vst [vmem:[%s1865 + $0x10] sm:%s1857] %v1868
                %v1870 = vld [vmem:[%s1864 + $0x10] sm:%s1857]
                %1871 = vst [vmem:[%s1865 + $0x20] sm:%s1857] %v1870
                %v1872 = vld [vmem:[%s1864 + $0x18] sm:%s1857]
                %1873 = vst [vmem:[%s1865 + $0x30] sm:%s1857] %v1872
                %v1874 = vld [vmem:[%s1864 + $0x20] sm:%s1857]
                %1875 = vst [vmem:[%s1865 + $0x40] sm:%s1857] %v1874
                %v1876 = vld [vmem:[%s1864 + $0x28] sm:%s1857]
                %1877 = vst [vmem:[%s1865 + $0x50] sm:%s1857] %v1876
                %v1878 = vld [vmem:[%s1864 + $0x30] sm:%s1857]
                %1879 = vst [vmem:[%s1865 + $0x60] sm:%s1857] %v1878
                %v1880 = vld [vmem:[%s1864 + $0x38] sm:%s1857]
                %1881 = vst [vmem:[%s1865 + $0x70] sm:%s1857] %v1880
              $region132: #{model_boeck_forward.1} parent=126 // loop_footer
                %s1863 = sadd.s32 1, %s1859
              $region133: #{model_boeck_forward.1} parent=126 // loop_footer_branch
                %1858 = sbr.rel target = $region129
              $region134: #{model_boeck_forward.1} parent=126 // loop_exit
                _
            $region127: #{model_boeck_forward.1} parent=118 // pred_fallthru
              _
          $region119: #{model_boeck_forward.1} parent=114 // pred_fallthru
            _
          %1910 = vnop
        $region115: #{model_boeck_forward.1} parent=85 // pred_fallthru
          _
      $region86: #{model_boeck_forward.1} parent=5 // pred_fallthru
        _
      %p1911 = scmp.le.s32.totalorder 2, %s14
      // Predicated region
      $region150: #{model_boeck_forward.1} parent=5 // pred_check
        %p1912 = pneg %p1911
      $region151: #{model_boeck_forward.1} parent=5 // pred_check_branch
        %1914 = sbr.rel (%p1912) target = $region153
      $region152: #{model_boeck_forward.1} parent=5 // pred_region
        %s1915 = ssub.s32 %s14, 2
        // Predicated region
        $region154: #{model_boeck_forward.1} parent=152 // pred_check
          %p1916 = pneg %p216
        $region155: #{model_boeck_forward.1} parent=152 // pred_check_branch
          %1918 = sbr.rel (%p1916) target = $region157
        $region156: #{model_boeck_forward.1} parent=152 // pred_region
          %s1919 = sand.u32 %s201, 1
          %s1920 = sand.u32 %s201, 1
          %s1921 = smul.addr %s1920, 64
          %s1922 = scalar_lea.vmem [#allocation7], %s1921
        $region157: #{model_boeck_forward.1} parent=152 // pred_fallthru
          _
      $region153: #{model_boeck_forward.1} parent=5 // pred_fallthru
        _
    $region6: #{model_boeck_forward.1} parent=1 // loop_footer
      %s18 = sadd.s32 1, %s14
    $region7: #{model_boeck_forward.1} parent=1 // loop_footer_branch
      %13 = sbr.rel target = $region3
    $region8: #{model_boeck_forward.1} parent=1 // loop_exit
      _

</llo_original>
